<compile_context>
chip_gen: v7x
topology: tpu7x:2x2x1
jax: 0.10.0
libtpu: 0.0.40
codegen_flags: <defaults>
</compile_context>

<pallas_src>
import functools

import jax
import jax.numpy as jnp
from jax.experimental import pallas as pl
from jax.experimental.pallas import tpu as pltpu


def _round_up(x, m):
    return (x + m - 1) // m * m


def _sphnca_kernel(scal_ref, x_ref, xT_ref, v_ref, AT_ref, rand_ref,
                   w1T_ref, w2T_ref, b2_ref, nAT_ref,
                   s_ref, wv_ref, lhs_ref, yT_ref, *, n_sys, n_per, nf):
    PN = n_sys * n_per
    KL = lhs_ref.shape[0]
    K1 = yT_ref.shape[0]

    h = scal_ref[0]
    fire_rate = scal_ref[1]
    inv_h2 = 1.0 / (h * h)
    coef = -2.0 * inv_h2

    # Cross-system blocks must be zero when systems are packed on the lanes.
    if n_sys > 1:
        s_ref[...] = jnp.zeros_like(s_ref)
        wv_ref[...] = jnp.zeros_like(wv_ref)

    # Pairwise SPH kernel per system, built directly transposed:
    # every [N, N] block is indexed [j = source (sublane), i = target (lane)].
    for p in range(n_sys):
        r0, r1 = p * n_per, (p + 1) * n_per
        x0c = x_ref[r0:r1, 0:1]                # [N, 1]
        x1c = x_ref[r0:r1, 1:2]
        x0r = xT_ref[0:1, r0:r1]               # [1, N]
        x1r = xT_ref[1:2, r0:r1]
        vcol = v_ref[r0:r1, :]                 # [N, 1] per-particle volume
        dx0 = x0r - x0c                        # dx0[j, i] = x_i0 - x_j0
        dx1 = x1r - x1c
        r2 = dx0 * dx0 + dx1 * dx1
        Wv = jnp.exp(-r2 * inv_h2) * vcol      # Wv[j, i] = W_ij * v_j
        wv_ref[r0:r1, r0:r1] = Wv                                       # f32 blur slice
        s_ref[r0:r1, r0:r1] = (Wv * (coef * dx0)).astype(jnp.bfloat16)  # K0^T
        s_ref[r0:r1, PN + r0:PN + r1] = (Wv * (coef * dx1)).astype(jnp.bfloat16)

    AT = AT_ref[...]                            # [F, PN] feature-major

    # Fused gradient matmul LHS: [A^T ; ones ; zero pad], tile-aligned bf16.
    lhs_ref[0:nf, :] = AT.astype(jnp.bfloat16)
    lhs_ref[nf:nf + 1, :] = jnp.ones((1, PN), jnp.bfloat16)
    if KL > nf + 1:
        lhs_ref[nf + 1:KL, :] = jnp.zeros((KL - nf - 1, PN), jnp.bfloat16)

    # One MXU product: per-feature gradient sums + ones-row row-sums.
    G = jnp.dot(lhs_ref[...], s_ref[...], preferred_element_type=jnp.float32)
    row0 = G[nf:nf + 1, 0:PN]                   # sum_j v_j dW_ij / dx0
    row1 = G[nf:nf + 1, PN:2 * PN]
    gA0 = G[0:nf, 0:PN] - AT * row0             # SPH difference-form gradient
    gA1 = G[0:nf, PN:2 * PN] - AT * row1

    # default_feature_process ([A | gA0 | gA1]) + b1-folding ones row, bf16.
    yT_ref[0:nf, :] = AT.astype(jnp.bfloat16)
    yT_ref[nf:2 * nf, :] = gA0.astype(jnp.bfloat16)
    yT_ref[2 * nf:3 * nf, :] = gA1.astype(jnp.bfloat16)
    yT_ref[3 * nf:3 * nf + 1, :] = jnp.ones((1, PN), jnp.bfloat16)
    if K1 > 3 * nf + 1:
        yT_ref[3 * nf + 1:K1, :] = jnp.zeros((K1 - 3 * nf - 1, PN), jnp.bfloat16)

    # 2-layer MLP, feature-major, bf16 MXU with f32 accumulation.
    h1 = jnp.dot(w1T_ref[...], yT_ref[...], preferred_element_type=jnp.float32)
    h1 = jnp.maximum(h1, 0.0)
    dA = jnp.dot(w2T_ref[...], h1.astype(jnp.bfloat16),
                 preferred_element_type=jnp.float32) + b2_ref[...]      # [2F+1, PN]

    # Gated update.
    gate = jax.nn.sigmoid(dA[0:nf, :])
    delta = jnp.tanh(dA[nf:2 * nf, :])
    mult = jax.nn.sigmoid(dA[2 * nf:2 * nf + 1, :])
    nA = AT * gate + delta * mult

    # Stochastic fire-rate mask (uniforms supplied by the wrapper).
    update = rand_ref[...] <= fire_rate         # [1, PN]
    nA = jnp.where(update, nA, AT)

    # Life masks: both blurs in f32 from the f32 Wv^T scratch, one MXU product.
    m_prev = (AT[3:4, :] > 0.1).astype(jnp.float32)
    m_new = (nA[3:4, :] > 0.1).astype(jnp.float32)
    masks = jnp.concatenate([m_prev, m_new], axis=0)                    # [2, PN]
    blur = jnp.dot(masks, wv_ref[...], preferred_element_type=jnp.float32)
    living = jnp.logical_and(blur[0:1, :] > 0.1, blur[1:2, :] > 0.1)
    nAT_ref[...] = nA * living.astype(jnp.float32)                      # [F, PN]


def _systems_per_block():
    """2 systems per 256-lane tile on v6e/v7x (256x256 MXU), else 1."""
    try:
        kind = jax.devices()[0].device_kind.lower()
    except Exception:
        return 1
    return 2 if ("v6" in kind or "v7" in kind) else 1


@functools.partial(jax.jit, static_argnames=("pack",))
def _sphnca_batched(x, v, A, h, fire_rate, key, w1, b1, w2, b2, *, pack):
    B, N, F = A.shape
    H = w1.shape[1]
    O = 2 * F + 1
    P = pack
    Bg = B // P
    PN = P * N
    KL = _round_up(F + 1, 16)         # fused-matmul LHS rows (bf16 tile)
    K1 = _round_up(3 * F + 1, 16)     # MLP contraction (3F features + ones row)

    scalars = jnp.stack([jnp.asarray(h, jnp.float32),
                         jnp.asarray(fire_rate, jnp.float32)])
    rand_u = jax.random.uniform(key, (Bg, 1, PN), jnp.float32)

    xg = x.reshape(Bg, PN, 2)                       # particle-major
    xTg = jnp.swapaxes(xg, 1, 2)                    # [Bg, 2, PN] lane-major
    vg = v.reshape(Bg, PN, 1)
    ATg = jnp.swapaxes(A.reshape(Bg, PN, F), 1, 2)  # [Bg, F, PN] feature-major

    w1T = jnp.zeros((H, K1), jnp.float32)
    w1T = w1T.at[:, :3 * F].set(w1.T)
    w1T = w1T.at[:, 3 * F].set(b1.reshape(-1))      # b1 folded (ones row in yT)
    w1T = w1T.astype(jnp.bfloat16)
    w2T = w2.T.astype(jnp.bfloat16)                 # [2F+1, H]
    b2c = b2.reshape(O, 1).astype(jnp.float32)

    kernel = functools.partial(_sphnca_kernel, n_sys=P, n_per=N, nf=F)

    nAT = pl.pallas_call(
        kernel,
        out_shape=jax.ShapeDtypeStruct((Bg, F, PN), jnp.float32),
        grid=(Bg,),
        in_specs=[
            pl.BlockSpec(memory_space=pltpu.MemorySpace.SMEM),   # [h, fire_rate]
            pl.BlockSpec((None, PN, 2), lambda b: (b, 0, 0)),    # x
            pl.BlockSpec((None, 2, PN), lambda b: (b, 0, 0)),    # x^T
            pl.BlockSpec((None, PN, 1), lambda b: (b, 0, 0)),    # v
            pl.BlockSpec((None, F, PN), lambda b: (b, 0, 0)),    # A^T
            pl.BlockSpec((None, 1, PN), lambda b: (b, 0, 0)),    # fire-rate uniforms
            pl.BlockSpec((H, K1), lambda b: (0, 0)),             # w1^T (b1 folded)
            pl.BlockSpec((O, H), lambda b: (0, 0)),              # w2^T
            pl.BlockSpec((O, 1), lambda b: (0, 0)),              # b2
        ],
        out_specs=pl.BlockSpec((None, F, PN), lambda b: (b, 0, 0)),
        scratch_shapes=[
            pltpu.VMEM((PN, 2 * PN), jnp.bfloat16),   # [K0^T | K1^T]
            pltpu.VMEM((PN, PN), jnp.float32),        # Wv^T (f32 for the blurs)
            pltpu.VMEM((KL, PN), jnp.bfloat16),       # fused-matmul LHS
            pltpu.VMEM((K1, PN), jnp.bfloat16),       # MLP input [A; gA0; gA1; 1]
        ],
        input_output_aliases={4: 0},                  # A^T buffer reused for nA^T
        compiler_params=pltpu.CompilerParams(
            dimension_semantics=("parallel",)),
    )(scalars, xg, xTg, vg, ATg, rand_u, w1T, w2T, b2c)

    nA = jnp.swapaxes(nAT, 1, 2).reshape(B, N, F)
    return x, nA


def sphnca_forward(x, v, A, h, fire_rate, key, w1, b1, w2, b2):
    """Batched SPHNCA.forward ('gated' rule). x:[B,N,2], v:[B,N,1], A:[B,N,F]."""
    B, N, F = A.shape
    assert F >= 4, "alpha channel is A[..., 3]"
    assert x.shape == (B, N, 2), "brute-force SPH assumes 2-D positions"
    pack = _systems_per_block()
    if B % pack != 0:
        pack = 1
    return _sphnca_batched(x, v, A, h, fire_rate, key, w1, b1, w2, b2, pack=pack)


def init_params(key, in_features, hidden_features):
    """Deterministic PyTorch-Linear-style init (weights stored as [in, out])."""
    out_features = in_features * 2 + 1          # 'gated' update rule
    k1, k2, k3, k4 = jax.random.split(key, 4)
    lim1 = 1.0 / jnp.sqrt(in_features * 3.0)
    lim2 = 1.0 / jnp.sqrt(float(hidden_features))
    w1 = jax.random.uniform(k1, (in_features * 3, hidden_features),
                            jnp.float32, -lim1, lim1)
    b1 = jax.random.uniform(k2, (1, hidden_features), jnp.float32, -lim1, lim1)
    w2 = jax.random.uniform(k3, (hidden_features, out_features),
                            jnp.float32, -lim2, lim2)
    b2 = jax.random.uniform(k4, (1, out_features), jnp.float32, -lim2, lim2)
    return w1, b1, w2, b2


if __name__ == "__main__":
    B = 4              # independent NCA systems, batched on the parallel grid axis
    N = 128            # SPH particles per system
    D = 2              # spatial dims
    F = 8              # in_features (>=4: alpha channel is A[..., 3])
    H = 32             # hidden_features
    h_smooth = 0.3     # SPH smoothing length
    fire_rate = 0.5

    key = jax.random.PRNGKey(0)
    kx, kv, kA, kp, kr = jax.random.split(key, 5)

    x = jax.random.uniform(kx, (B, N, D), jnp.float32, 0.0, 1.0)    # positions
    v = jax.random.uniform(kv, (B, N, 1), jnp.float32, 0.05, 0.15)  # volumes
    A = jax.random.uniform(kA, (B, N, F), jnp.float32, 0.0, 1.0)    # features

    w1, b1, w2, b2 = init_params(kp, F, H)

    x_out, nA = sphnca_forward(x, v, A, h_smooth, fire_rate, kr,
                               w1, b1, w2, b2)
    jax.block_until_ready(nA)

    assert x_out.shape == (B, N, D) and nA.shape == (B, N, F)
    assert nA.dtype == jnp.float32
    assert bool(jnp.all(jnp.isfinite(nA)))
    print("KERNEL_OK")
</pallas_src>

<mosaic_0001>
module attributes {stable_mosaic.version = 11 : i64} {
  func.func @_sphnca_kernel(%arg0: i32, %arg1: memref<2xf32, #tpu.memory_space<smem>>, %arg2: memref<1x128x2xf32, #tpu.memory_space<vmem>>, %arg3: memref<1x2x128xf32, #tpu.memory_space<vmem>>, %arg4: memref<1x128x1xf32, #tpu.memory_space<vmem>>, %arg5: memref<1x8x128xf32, #tpu.memory_space<vmem>>, %arg6: memref<1x1x128xf32, #tpu.memory_space<vmem>>, %arg7: memref<32x32xbf16, #tpu.memory_space<vmem>>, %arg8: memref<17x32xbf16, #tpu.memory_space<vmem>>, %arg9: memref<17x1xf32, #tpu.memory_space<vmem>>, %arg10: memref<1x8x128xf32, #tpu.memory_space<vmem>>, %arg11: memref<128x256xbf16, #tpu.memory_space<vmem>>, %arg12: memref<128x128xf32, #tpu.memory_space<vmem>>, %arg13: memref<16x128xbf16, #tpu.memory_space<vmem>>, %arg14: memref<32x128xbf16, #tpu.memory_space<vmem>>) attributes {dimension_semantics = [#tpu.dimension_semantics<parallel>], iteration_bounds = array<i64: 4>, scalar_prefetch = 0 : i64, scratch_operands = 4 : i64, tpu.core_type = #tpu.core_type<tc>, window_params = [{transform_indices = @transform_0, window_bounds = array<i64: 2>}, {transform_indices = @transform_1, window_bounds = array<i64: 1, 128, 2>}, {transform_indices = @transform_2, window_bounds = array<i64: 1, 2, 128>}, {transform_indices = @transform_3, window_bounds = array<i64: 1, 128, 1>}, {transform_indices = @transform_4, window_bounds = array<i64: 1, 8, 128>}, {transform_indices = @transform_5, window_bounds = array<i64: 1, 1, 128>}, {pipeline_mode = #tpu.pipeline_mode<synchronous>, transform_indices = @transform_6, window_bounds = array<i64: 32, 32>}, {pipeline_mode = #tpu.pipeline_mode<synchronous>, transform_indices = @transform_7, window_bounds = array<i64: 17, 32>}, {pipeline_mode = #tpu.pipeline_mode<synchronous>, transform_indices = @transform_8, window_bounds = array<i64: 17, 1>}, {transform_indices = @transform_9, window_bounds = array<i64: 1, 8, 128>}]} {
    %c0 = arith.constant 0 : index
    %0 = memref.load %arg1[%c0] : memref<2xf32, #tpu.memory_space<smem>>
    %c1 = arith.constant 1 : index
    %1 = memref.load %arg1[%c1] : memref<2xf32, #tpu.memory_space<smem>>
    %2 = arith.mulf %0, %0 : f32
    %cst = arith.constant 1.000000e+00 : f32
    %3 = arith.divf %cst, %2 : f32
    %cst_0 = arith.constant -2.000000e+00 : f32
    %4 = arith.mulf %cst_0, %3 : f32
    %c0_1 = arith.constant 0 : index
    %c0_2 = arith.constant 0 : index
    %c0_3 = arith.constant 0 : index
    %5 = vector.load %arg2[%c0_1, %c0_2, %c0_3] : memref<1x128x2xf32, #tpu.memory_space<vmem>>, vector<1x128x1xf32>
    %6 = vector.shape_cast %5 : vector<1x128x1xf32> to vector<128x1xf32>
    %c0_4 = arith.constant 0 : index
    %c0_5 = arith.constant 0 : index
    %c1_6 = arith.constant 1 : index
    %7 = vector.load %arg2[%c0_4, %c0_5, %c1_6] : memref<1x128x2xf32, #tpu.memory_space<vmem>>, vector<1x128x1xf32>
    %8 = vector.shape_cast %7 : vector<1x128x1xf32> to vector<128x1xf32>
    %c0_7 = arith.constant 0 : index
    %c0_8 = arith.constant 0 : index
    %c0_9 = arith.constant 0 : index
    %9 = vector.load %arg3[%c0_7, %c0_8, %c0_9] : memref<1x2x128xf32, #tpu.memory_space<vmem>>, vector<1x1x128xf32>
    %10 = vector.shape_cast %9 : vector<1x1x128xf32> to vector<1x128xf32>
    %c0_10 = arith.constant 0 : index
    %c1_11 = arith.constant 1 : index
    %c0_12 = arith.constant 0 : index
    %11 = vector.load %arg3[%c0_10, %c1_11, %c0_12] : memref<1x2x128xf32, #tpu.memory_space<vmem>>, vector<1x1x128xf32>
    %12 = vector.shape_cast %11 : vector<1x1x128xf32> to vector<1x128xf32>
    %c0_13 = arith.constant 0 : index
    %c0_14 = arith.constant 0 : index
    %c0_15 = arith.constant 0 : index
    %13 = vector.load %arg4[%c0_13, %c0_14, %c0_15] : memref<1x128x1xf32, #tpu.memory_space<vmem>>, vector<1x128x1xf32>
    %14 = vector.shape_cast %13 : vector<1x128x1xf32> to vector<128x1xf32>
    %15 = vector.broadcast %10 : vector<1x128xf32> to vector<128x128xf32>
    %16 = vector.broadcast %6 : vector<128x1xf32> to vector<128x128xf32>
    %17 = arith.subf %15, %16 : vector<128x128xf32>
    %18 = vector.broadcast %12 : vector<1x128xf32> to vector<128x128xf32>
    %19 = vector.broadcast %8 : vector<128x1xf32> to vector<128x128xf32>
    %20 = arith.subf %18, %19 : vector<128x128xf32>
    %21 = arith.mulf %17, %17 : vector<128x128xf32>
    %22 = arith.mulf %20, %20 : vector<128x128xf32>
    %23 = arith.addf %21, %22 : vector<128x128xf32>
    %cst_16 = arith.constant 0.000000e+00 : f32
    %24 = vector.broadcast %cst_16 : f32 to vector<128x128xf32>
    %25 = arith.subf %24, %23 : vector<128x128xf32>
    %26 = vector.broadcast %3 : f32 to vector<128x128xf32>
    %27 = arith.mulf %25, %26 : vector<128x128xf32>
    %28 = math.exp %27 : vector<128x128xf32>
    %29 = vector.broadcast %14 : vector<128x1xf32> to vector<128x128xf32>
    %30 = arith.mulf %28, %29 : vector<128x128xf32>
    %c0_17 = arith.constant 0 : index
    %c0_18 = arith.constant 0 : index
    %31 = vector.load %arg12[%c0_17, %c0_18] : memref<128x128xf32, #tpu.memory_space<vmem>>, vector<128x128xf32>
    tpu.vector_store %arg12[%c0_17, %c0_18], %30 {strides = array<i32>} : memref<128x128xf32, #tpu.memory_space<vmem>>, vector<128x128xf32>,
    %32 = vector.broadcast %4 : f32 to vector<128x128xf32>
    %33 = arith.mulf %32, %17 : vector<128x128xf32>
    %34 = arith.mulf %30, %33 : vector<128x128xf32>
    %35 = arith.truncf %34 : vector<128x128xf32> to vector<128x128xbf16>
    %c0_19 = arith.constant 0 : index
    %c0_20 = arith.constant 0 : index
    %36 = vector.load %arg11[%c0_19, %c0_20] : memref<128x256xbf16, #tpu.memory_space<vmem>>, vector<128x128xbf16>
    tpu.vector_store %arg11[%c0_19, %c0_20], %35 {strides = array<i32>} : memref<128x256xbf16, #tpu.memory_space<vmem>>, vector<128x128xbf16>,
    %37 = vector.broadcast %4 : f32 to vector<128x128xf32>
    %38 = arith.mulf %37, %20 : vector<128x128xf32>
    %39 = arith.mulf %30, %38 : vector<128x128xf32>
    %40 = arith.truncf %39 : vector<128x128xf32> to vector<128x128xbf16>
    %c0_21 = arith.constant 0 : index
    %c128 = arith.constant 128 : index
    %41 = vector.load %arg11[%c0_21, %c128] : memref<128x256xbf16, #tpu.memory_space<vmem>>, vector<128x128xbf16>
    tpu.vector_store %arg11[%c0_21, %c128], %40 {strides = array<i32>} : memref<128x256xbf16, #tpu.memory_space<vmem>>, vector<128x128xbf16>,
    %c0_22 = arith.constant 0 : index
    %c0_23 = arith.constant 0 : index
    %c0_24 = arith.constant 0 : index
    %42 = vector.load %arg5[%c0_22, %c0_23, %c0_24] : memref<1x8x128xf32, #tpu.memory_space<vmem>>, vector<1x8x128xf32>
    %43 = vector.shape_cast %42 : vector<1x8x128xf32> to vector<8x128xf32>
    %44 = arith.truncf %43 : vector<8x128xf32> to vector<8x128xbf16>
    %c0_25 = arith.constant 0 : index
    %c0_26 = arith.constant 0 : index
    %45 = vector.load %arg13[%c0_25, %c0_26] : memref<16x128xbf16, #tpu.memory_space<vmem>>, vector<8x128xbf16>
    tpu.vector_store %arg13[%c0_25, %c0_26], %44 {strides = array<i32>} : memref<16x128xbf16, #tpu.memory_space<vmem>>, vector<8x128xbf16>,
    %cst_27 = arith.constant 1.000000e+00 : bf16
    %46 = vector.broadcast %cst_27 : bf16 to vector<1x128xbf16>
    %c8 = arith.constant 8 : index
    %c0_28 = arith.constant 0 : index
    %47 = vector.load %arg13[%c8, %c0_28] : memref<16x128xbf16, #tpu.memory_space<vmem>>, vector<1x128xbf16>
    tpu.vector_store %arg13[%c8, %c0_28], %46 {strides = array<i32>} : memref<16x128xbf16, #tpu.memory_space<vmem>>, vector<1x128xbf16>,
    %cst_29 = arith.constant 0.000000e+00 : bf16
    %48 = vector.broadcast %cst_29 : bf16 to vector<7x128xbf16>
    %c9 = arith.constant 9 : index
    %c0_30 = arith.constant 0 : index
    %49 = vector.load %arg13[%c9, %c0_30] : memref<16x128xbf16, #tpu.memory_space<vmem>>, vector<7x128xbf16>
    tpu.vector_store %arg13[%c9, %c0_30], %48 {strides = array<i32>} : memref<16x128xbf16, #tpu.memory_space<vmem>>, vector<7x128xbf16>,
    %c0_31 = arith.constant 0 : index
    %c0_32 = arith.constant 0 : index
    %50 = vector.load %arg13[%c0_31, %c0_32] : memref<16x128xbf16, #tpu.memory_space<vmem>>, vector<16x128xbf16>
    %c0_33 = arith.constant 0 : index
    %c0_34 = arith.constant 0 : index
    %51 = vector.load %arg11[%c0_33, %c0_34] : memref<128x256xbf16, #tpu.memory_space<vmem>>, vector<128x256xbf16>
    %cst_35 = arith.constant dense<0.000000e+00> : vector<16x256xf32>
    %52 = tpu.matmul %50, %51, %cst_35 {dimension_numbers = #tpu.dot_dimension_numbers<[1], [0], [0], [1], [0, 0, 1, 1], [], []>} : vector<16x128xbf16>, vector<128x256xbf16>, vector<16x256xf32> -> vector<16x256xf32>
    %53 = vector.extract_strided_slice %52 {offsets = [8, 0], sizes = [1, 128], strides = [1, 1]} : vector<16x256xf32> to vector<1x128xf32>
    %54 = vector.extract_strided_slice %52 {offsets = [8, 128], sizes = [1, 128], strides = [1, 1]} : vector<16x256xf32> to vector<1x128xf32>
    %55 = vector.extract_strided_slice %52 {offsets = [0, 0], sizes = [8, 128], strides = [1, 1]} : vector<16x256xf32> to vector<8x128xf32>
    %56 = vector.broadcast %53 : vector<1x128xf32> to vector<8x128xf32>
    %57 = arith.mulf %43, %56 : vector<8x128xf32>
    %58 = arith.subf %55, %57 : vector<8x128xf32>
    %59 = vector.extract_strided_slice %52 {offsets = [0, 128], sizes = [8, 128], strides = [1, 1]} : vector<16x256xf32> to vector<8x128xf32>
    %60 = vector.broadcast %54 : vector<1x128xf32> to vector<8x128xf32>
    %61 = arith.mulf %43, %60 : vector<8x128xf32>
    %62 = arith.subf %59, %61 : vector<8x128xf32>
    %63 = arith.truncf %43 : vector<8x128xf32> to vector<8x128xbf16>
    %c0_36 = arith.constant 0 : index
    %c0_37 = arith.constant 0 : index
    %64 = vector.load %arg14[%c0_36, %c0_37] : memref<32x128xbf16, #tpu.memory_space<vmem>>, vector<8x128xbf16>
    tpu.vector_store %arg14[%c0_36, %c0_37], %63 {strides = array<i32>} : memref<32x128xbf16, #tpu.memory_space<vmem>>, vector<8x128xbf16>,
    %65 = arith.truncf %58 : vector<8x128xf32> to vector<8x128xbf16>
    %c8_38 = arith.constant 8 : index
    %c0_39 = arith.constant 0 : index
    %66 = vector.load %arg14[%c8_38, %c0_39] : memref<32x128xbf16, #tpu.memory_space<vmem>>, vector<8x128xbf16>
    tpu.vector_store %arg14[%c8_38, %c0_39], %65 {strides = array<i32>} : memref<32x128xbf16, #tpu.memory_space<vmem>>, vector<8x128xbf16>,
    %67 = arith.truncf %62 : vector<8x128xf32> to vector<8x128xbf16>
    %c16 = arith.constant 16 : index
    %c0_40 = arith.constant 0 : index
    %68 = vector.load %arg14[%c16, %c0_40] : memref<32x128xbf16, #tpu.memory_space<vmem>>, vector<8x128xbf16>
    tpu.vector_store %arg14[%c16, %c0_40], %67 {strides = array<i32>} : memref<32x128xbf16, #tpu.memory_space<vmem>>, vector<8x128xbf16>,
    %cst_41 = arith.constant 1.000000e+00 : bf16
    %69 = vector.broadcast %cst_41 : bf16 to vector<1x128xbf16>
    %c24 = arith.constant 24 : index
    %c0_42 = arith.constant 0 : index
    %70 = vector.load %arg14[%c24, %c0_42] : memref<32x128xbf16, #tpu.memory_space<vmem>>, vector<1x128xbf16>
    tpu.vector_store %arg14[%c24, %c0_42], %69 {strides = array<i32>} : memref<32x128xbf16, #tpu.memory_space<vmem>>, vector<1x128xbf16>,
    %cst_43 = arith.constant 0.000000e+00 : bf16
    %71 = vector.broadcast %cst_43 : bf16 to vector<7x128xbf16>
    %c25 = arith.constant 25 : index
    %c0_44 = arith.constant 0 : index
    %72 = vector.load %arg14[%c25, %c0_44] : memref<32x128xbf16, #tpu.memory_space<vmem>>, vector<7x128xbf16>
    tpu.vector_store %arg14[%c25, %c0_44], %71 {strides = array<i32>} : memref<32x128xbf16, #tpu.memory_space<vmem>>, vector<7x128xbf16>,
    %c0_45 = arith.constant 0 : index
    %c0_46 = arith.constant 0 : index
    %73 = vector.load %arg7[%c0_45, %c0_46] : memref<32x32xbf16, #tpu.memory_space<vmem>>, vector<32x32xbf16>
    %c0_47 = arith.constant 0 : index
    %c0_48 = arith.constant 0 : index
    %74 = vector.load %arg14[%c0_47, %c0_48] : memref<32x128xbf16, #tpu.memory_space<vmem>>, vector<32x128xbf16>
    %cst_49 = arith.constant dense<0.000000e+00> : vector<32x128xf32>
    %75 = tpu.matmul %73, %74, %cst_49 {dimension_numbers = #tpu.dot_dimension_numbers<[1], [0], [0], [1], [0, 0, 1, 1], [], []>} : vector<32x32xbf16>, vector<32x128xbf16>, vector<32x128xf32> -> vector<32x128xf32>
    %cst_50 = arith.constant 0.000000e+00 : f32
    %76 = vector.broadcast %cst_50 : f32 to vector<32x128xf32>
    %77 = arith.maximumf %75, %76 : vector<32x128xf32>
    %c0_51 = arith.constant 0 : index
    %c0_52 = arith.constant 0 : index
    %78 = vector.load %arg8[%c0_51, %c0_52] : memref<17x32xbf16, #tpu.memory_space<vmem>>, vector<17x32xbf16>
    %79 = arith.truncf %77 : vector<32x128xf32> to vector<32x128xbf16>
    %cst_53 = arith.constant dense<0.000000e+00> : vector<17x128xf32>
    %80 = tpu.matmul %78, %79, %cst_53 {dimension_numbers = #tpu.dot_dimension_numbers<[1], [0], [0], [1], [0, 0, 1, 1], [], []>} : vector<17x32xbf16>, vector<32x128xbf16>, vector<17x128xf32> -> vector<17x128xf32>
    %c0_54 = arith.constant 0 : index
    %c0_55 = arith.constant 0 : index
    %81 = vector.load %arg9[%c0_54, %c0_55] : memref<17x1xf32, #tpu.memory_space<vmem>>, vector<17x1xf32>
    %82 = vector.broadcast %81 : vector<17x1xf32> to vector<17x128xf32>
    %83 = arith.addf %80, %82 : vector<17x128xf32>
    %84 = vector.extract_strided_slice %83 {offsets = [0, 0], sizes = [8, 128], strides = [1, 1]} : vector<17x128xf32> to vector<8x128xf32>
    %85 = arith.negf %84 : vector<8x128xf32>
    %86 = math.exp %85 : vector<8x128xf32>
    %cst_56 = arith.constant 1.000000e+00 : f32
    %87 = vector.broadcast %cst_56 : f32 to vector<8x128xf32>
    %88 = arith.addf %87, %86 : vector<8x128xf32>
    %89 = arith.divf %87, %88 : vector<8x128xf32>
    %90 = vector.extract_strided_slice %83 {offsets = [8, 0], sizes = [8, 128], strides = [1, 1]} : vector<17x128xf32> to vector<8x128xf32>
    %91 = math.tanh %90 : vector<8x128xf32>
    %92 = vector.extract_strided_slice %83 {offsets = [16, 0], sizes = [1, 128], strides = [1, 1]} : vector<17x128xf32> to vector<1x128xf32>
    %93 = arith.negf %92 : vector<1x128xf32>
    %94 = math.exp %93 : vector<1x128xf32>
    %cst_57 = arith.constant 1.000000e+00 : f32
    %95 = vector.broadcast %cst_57 : f32 to vector<1x128xf32>
    %96 = arith.addf %95, %94 : vector<1x128xf32>
    %97 = arith.divf %95, %96 : vector<1x128xf32>
    %98 = arith.mulf %43, %89 : vector<8x128xf32>
    %99 = vector.broadcast %97 : vector<1x128xf32> to vector<8x128xf32>
    %100 = arith.mulf %91, %99 : vector<8x128xf32>
    %101 = arith.addf %98, %100 : vector<8x128xf32>
    %c0_58 = arith.constant 0 : index
    %c0_59 = arith.constant 0 : index
    %c0_60 = arith.constant 0 : index
    %102 = vector.load %arg6[%c0_58, %c0_59, %c0_60] : memref<1x1x128xf32, #tpu.memory_space<vmem>>, vector<1x1x128xf32>
    %103 = vector.shape_cast %102 : vector<1x1x128xf32> to vector<1x128xf32>
    %104 = vector.broadcast %1 : f32 to vector<1x128xf32>
    %105 = arith.cmpf ole, %103, %104 : vector<1x128xf32>
    %106 = vector.shape_cast %105 : vector<1x128xi1> to vector<1x128xi1>
    %107 = vector.broadcast %106 : vector<1x128xi1> to vector<8x128xi1>
    %108 = arith.select %107, %101, %43 : vector<8x128xi1>, vector<8x128xf32>
    %109 = vector.extract_strided_slice %43 {offsets = [3, 0], sizes = [1, 128], strides = [1, 1]} : vector<8x128xf32> to vector<1x128xf32>
    %cst_61 = arith.constant 1.000000e-01 : f32
    %110 = vector.broadcast %cst_61 : f32 to vector<1x128xf32>
    %111 = arith.cmpf ogt, %109, %110 : vector<1x128xf32>
    %112 = arith.extui %111 : vector<1x128xi1> to vector<1x128xi32>
    %113 = arith.sitofp %112 : vector<1x128xi32> to vector<1x128xf32>
    %114 = vector.extract_strided_slice %108 {offsets = [3, 0], sizes = [1, 128], strides = [1, 1]} : vector<8x128xf32> to vector<1x128xf32>
    %cst_62 = arith.constant 1.000000e-01 : f32
    %115 = vector.broadcast %cst_62 : f32 to vector<1x128xf32>
    %116 = arith.cmpf ogt, %114, %115 : vector<1x128xf32>
    %117 = arith.extui %116 : vector<1x128xi1> to vector<1x128xi32>
    %118 = arith.sitofp %117 : vector<1x128xi32> to vector<1x128xf32>
    %119 = tpu.concatenate %113, %118 in 0 : vector<1x128xf32>, vector<1x128xf32> -> vector<2x128xf32>
    %c0_63 = arith.constant 0 : index
    %c0_64 = arith.constant 0 : index
    %120 = vector.load %arg12[%c0_63, %c0_64] : memref<128x128xf32, #tpu.memory_space<vmem>>, vector<128x128xf32>
    %cst_65 = arith.constant dense<0.000000e+00> : vector<2x128xf32>
    %121 = tpu.matmul %119, %120, %cst_65 {dimension_numbers = #tpu.dot_dimension_numbers<[1], [0], [0], [1], [0, 0, 1, 1], [], []>} : vector<2x128xf32>, vector<128x128xf32>, vector<2x128xf32> -> vector<2x128xf32>
    %122 = vector.extract_strided_slice %121 {offsets = [0, 0], sizes = [1, 128], strides = [1, 1]} : vector<2x128xf32> to vector<1x128xf32>
    %cst_66 = arith.constant 1.000000e-01 : f32
    %123 = vector.broadcast %cst_66 : f32 to vector<1x128xf32>
    %124 = arith.cmpf ogt, %122, %123 : vector<1x128xf32>
    %125 = vector.extract_strided_slice %121 {offsets = [1, 0], sizes = [1, 128], strides = [1, 1]} : vector<2x128xf32> to vector<1x128xf32>
    %cst_67 = arith.constant 1.000000e-01 : f32
    %126 = vector.broadcast %cst_67 : f32 to vector<1x128xf32>
    %127 = arith.cmpf ogt, %125, %126 : vector<1x128xf32>
    %128 = arith.andi %124, %127 : vector<1x128xi1>
    %129 = arith.extui %128 : vector<1x128xi1> to vector<1x128xi32>
    %130 = arith.sitofp %129 : vector<1x128xi32> to vector<1x128xf32>
    %131 = vector.broadcast %130 : vector<1x128xf32> to vector<8x128xf32>
    %132 = arith.mulf %108, %131 : vector<8x128xf32>
    %c0_68 = arith.constant 0 : index
    %c0_69 = arith.constant 0 : index
    %c0_70 = arith.constant 0 : index
    %133 = vector.load %arg10[%c0_68, %c0_69, %c0_70] : memref<1x8x128xf32, #tpu.memory_space<vmem>>, vector<1x8x128xf32>
    %134 = vector.shape_cast %133 : vector<1x8x128xf32> to vector<8x128xf32>
    %135 = vector.shape_cast %132 : vector<8x128xf32> to vector<1x8x128xf32>
    tpu.vector_store %arg10[%c0_68, %c0_69, %c0_70], %135 {strides = array<i32>} : memref<1x8x128xf32, #tpu.memory_space<vmem>>, vector<1x8x128xf32>,
    return
  }
  func.func @transform_0(%arg0: i32) -> i32 {
    %c0_i32 = arith.constant 0 : i32
    %c0_i32_0 = arith.constant 0 : i32
    return %c0_i32 : i32
  }
  func.func @transform_1(%arg0: i32) -> (i32, i32, i32) {
    %c0_i32 = arith.constant 0 : i32
    %c0_i32_0 = arith.constant 0 : i32
    %c0_i32_1 = arith.constant 0 : i32
    return %arg0, %c0_i32, %c0_i32_0 : i32, i32, i32
  }
  func.func @transform_2(%arg0: i32) -> (i32, i32, i32) {
    %c0_i32 = arith.constant 0 : i32
    %c0_i32_0 = arith.constant 0 : i32
    %c0_i32_1 = arith.constant 0 : i32
    return %arg0, %c0_i32, %c0_i32_0 : i32, i32, i32
  }
  func.func @transform_3(%arg0: i32) -> (i32, i32, i32) {
    %c0_i32 = arith.constant 0 : i32
    %c0_i32_0 = arith.constant 0 : i32
    %c0_i32_1 = arith.constant 0 : i32
    return %arg0, %c0_i32, %c0_i32_0 : i32, i32, i32
  }
  func.func @transform_4(%arg0: i32) -> (i32, i32, i32) {
    %c0_i32 = arith.constant 0 : i32
    %c0_i32_0 = arith.constant 0 : i32
    %c0_i32_1 = arith.constant 0 : i32
    return %arg0, %c0_i32, %c0_i32_0 : i32, i32, i32
  }
  func.func @transform_5(%arg0: i32) -> (i32, i32, i32) {
    %c0_i32 = arith.constant 0 : i32
    %c0_i32_0 = arith.constant 0 : i32
    %c0_i32_1 = arith.constant 0 : i32
    return %arg0, %c0_i32, %c0_i32_0 : i32, i32, i32
  }
  func.func @transform_6(%arg0: i32) -> (i32, i32) {
    %c0_i32 = arith.constant 0 : i32
    %c0_i32_0 = arith.constant 0 : i32
    %c0_i32_1 = arith.constant 0 : i32
    return %c0_i32, %c0_i32_0 : i32, i32
  }
  func.func @transform_7(%arg0: i32) -> (i32, i32) {
    %c0_i32 = arith.constant 0 : i32
    %c0_i32_0 = arith.constant 0 : i32
    %c0_i32_1 = arith.constant 0 : i32
    return %c0_i32, %c0_i32_0 : i32, i32
  }
  func.func @transform_8(%arg0: i32) -> (i32, i32) {
    %c0_i32 = arith.constant 0 : i32
    %c0_i32_0 = arith.constant 0 : i32
    %c0_i32_1 = arith.constant 0 : i32
    return %c0_i32, %c0_i32_0 : i32, i32
  }
  func.func @transform_9(%arg0: i32) -> (i32, i32, i32) {
    %c0_i32 = arith.constant 0 : i32
    %c0_i32_0 = arith.constant 0 : i32
    %c0_i32_1 = arith.constant 0 : i32
    return %arg0, %c0_i32, %c0_i32_0 : i32, i32, i32
  }
}

</mosaic_0001>

<llo_original>
// kernel: _sphnca_batched.1
$region0: #{_sphnca_batched.1}
  #allocation0 [shape = 'u32[]', space=smem, size = 0x4, offset = 0x4, fixed_abs, tag = 'smem constant byte address 0x4 - core index']
  #allocation1 [shape = 'u32[144,128]{1,0:T(1,128)}', space=vmem, size = 0x12000, scoped, tag = 'internal scratch']
  #allocation2 [shape = 'bf16[128,256]{1,0:T(16,128)(2,1)}', space=vmem, size = 0x10000, scoped, tag = 'scratch operand']
  #allocation3 [shape = 'f32[128,128]{1,0:T(8,128)}', space=vmem, size = 0x10000, scoped, tag = 'scratch operand']
  #allocation4 [shape = 'bf16[16,128]{1,0:T(16,128)(2,1)}', space=vmem, size = 0x1000, scoped, tag = 'scratch operand']
  #allocation5 [shape = 'bf16[32,128]{1,0:T(16,128)(2,1)}', space=vmem, size = 0x2000, scoped, tag = 'scratch operand']
  %s0 = inlined_call_operand.vmem [shape: f32[2], index: 0, kind: input, shape index: {}]
  %s1 = inlined_call_operand.vmem [shape: f32[4,128,2], index: 1, kind: input, shape index: {}]
  %s2 = inlined_call_operand.vmem [shape: f32[4,2,128], index: 2, kind: input, shape index: {}]
  %s3 = inlined_call_operand.vmem [shape: f32[4,128,1], index: 3, kind: input, shape index: {}]
  %s4 = inlined_call_operand.vmem [shape: f32[4,8,128], index: 4, kind: input, shape index: {}, may-alias: {4,9}]
  %s5 = inlined_call_operand.vmem [shape: f32[4,1,128], index: 5, kind: input, shape index: {}]
  %s6 = inlined_call_operand.vmem [shape: bf16[32,32], index: 6, kind: input, shape index: {}]
  %s7 = inlined_call_operand.vmem [shape: bf16[17,32], index: 7, kind: input, shape index: {}]
  %s8 = inlined_call_operand.vmem [shape: f32[17,1], index: 8, kind: input, shape index: {}]
  %s9 = inlined_call_operand.vmem [shape: f32[4,8,128], index: 9, kind: output, shape index: {}, may-alias: {4,9}]
  %s10 = sld [smem:[#allocation0]]
  $region73: #{_sphnca_batched.1} parent=0
    _
  %s12 = ssub.s32 1, %s10
  %s13 = scalar_select 0, %s12, %s10
  $region1: #{_sphnca_batched.1} parent=0
    #allocation6 [shape = 'u8[512]{0}', space=smem, size = 0x200, scoped, tag = 'input window, operand 0, single buffered']
    #allocation7 [shape = 's32[2]{0}', space=sflag, size = 0x8, scoped, tag = 'scoped memory for _sphnca_batched.1']
    %14 = vsyncpa [#allocation7], 0
    loop: start=0, step=1, limit=6
    $region2: #{_sphnca_batched.1} parent=1 // loop_pre_header
      _
    $region3: #{_sphnca_batched.1} parent=1 // loop_header
      %s16 = sphi 0, %s20
      %p17 = scmp.ge.s32.totalorder %s16, 6
      %s24 = sphi 0, %s24
      %s26 = sphi 0, %s24
      %s27 = sphi 0, %s26
      %s41 = sphi 0, %s27
      %s47 = sphi 0, %s49
      %s50 = sphi 0, %s47
      %s51 = sphi 0, %s50
      %s67 = sphi 0, %s51
      %s73 = sphi 0, %s75
      %s76 = sphi 0, %s73
      %s77 = sphi 0, %s76
      %s93 = sphi 0, %s77
      %s99 = sphi 0, %s101
      %s102 = sphi 0, %s99
      %s103 = sphi 0, %s102
      %s119 = sphi 0, %s103
      %s125 = sphi 0, %s127
      %s128 = sphi 0, %s125
      %s129 = sphi 0, %s128
      %s145 = sphi 0, %s129
      %s151 = sphi 0, %s153
      %s154 = sphi 0, %s151
      %s155 = sphi 0, %s154
      %s171 = sphi 0, %s155
      %s175 = sphi 0, %s175
      %s177 = sphi 0, %s175
      %s178 = sphi 0, %s177
      %s192 = sphi 0, %s178
      %s196 = sphi 0, %s196
      %s198 = sphi 0, %s196
      %s199 = sphi 0, %s198
      %s213 = sphi 0, %s199
      %s217 = sphi 0, %s217
      %s219 = sphi 0, %s217
      %s220 = sphi 0, %s219
      %s234 = sphi 0, %s220
      %s240 = sphi 0, %s242
      %s243 = sphi 0, %s240
      %s244 = sphi 0, %s243
      %s260 = sphi 0, %s244
    $region4: #{_sphnca_batched.1} parent=1 // loop_header_branch
      %19 = sbr.rel (%p17) target = $region8
    $region5: #{_sphnca_batched.1} parent=1 // loop_body
      %s21 = ssub.s32 %s16, 1
      %s22 = ssub.s32 %s16, 2
      %s23 = sadd.s32 %s16, 1
      %s25 = sadd.s32 %s24, 1
      %p28 = scmp.eq.s32.totalorder %s16, 3
      %p29 = scmp.ne.s32.totalorder %s24, %s26
      %p30 = scmp.eq.s32.totalorder %s16, 0
      %p31 = por %p29, %p30
      %p32 = scmp.ne.s32.totalorder %s24, %s26
      %p33 = scmp.eq.s32.totalorder %s21, 3
      %p34 = por %p32, %p33
      %p35 = scmp.ne.s32.totalorder %s26, %s27
      %p36 = scmp.eq.s32.totalorder %s21, 0
      %p37 = por %p35, %p36
      %p38 = scmp.ne.s32.totalorder %s26, %s27
      %p39 = scmp.eq.s32.totalorder %s22, 3
      %p40 = por %p38, %p39
      %p42 = scmp.ne.s32.totalorder %s27, %s41
      %p43 = scmp.eq.s32.totalorder %s22, 0
      %p44 = por %p42, %p43
      %s45 = ssub.s32 %s16, %s23
      %p46 = scmp.eq.s32.totalorder %s45, 0
      %s48 = sadd.s32 %s47, 1
      %s49 = scalar_select %p46, %s47, %s48
      %p52 = pneg %p46
      %p53 = scmp.eq.s32.totalorder %s16, 3
      %p54 = por %p52, %p53
      %p55 = scmp.ne.s32.totalorder %s47, %s50
      %p56 = scmp.eq.s32.totalorder %s16, 0
      %p57 = por %p55, %p56
      %p58 = scmp.ne.s32.totalorder %s47, %s50
      %p59 = scmp.eq.s32.totalorder %s21, 3
      %p60 = por %p58, %p59
      %p61 = scmp.ne.s32.totalorder %s50, %s51
      %p62 = scmp.eq.s32.totalorder %s21, 0
      %p63 = por %p61, %p62
      %p64 = scmp.ne.s32.totalorder %s50, %s51
      %p65 = scmp.eq.s32.totalorder %s22, 3
      %p66 = por %p64, %p65
      %p68 = scmp.ne.s32.totalorder %s51, %s67
      %p69 = scmp.eq.s32.totalorder %s22, 0
      %p70 = por %p68, %p69
      %s71 = ssub.s32 %s16, %s23
      %p72 = scmp.eq.s32.totalorder %s71, 0
      %s74 = sadd.s32 %s73, 1
      %s75 = scalar_select %p72, %s73, %s74
      %p78 = pneg %p72
      %p79 = scmp.eq.s32.totalorder %s16, 3
      %p80 = por %p78, %p79
      %p81 = scmp.ne.s32.totalorder %s73, %s76
      %p82 = scmp.eq.s32.totalorder %s16, 0
      %p83 = por %p81, %p82
      %p84 = scmp.ne.s32.totalorder %s73, %s76
      %p85 = scmp.eq.s32.totalorder %s21, 3
      %p86 = por %p84, %p85
      %p87 = scmp.ne.s32.totalorder %s76, %s77
      %p88 = scmp.eq.s32.totalorder %s21, 0
      %p89 = por %p87, %p88
      %p90 = scmp.ne.s32.totalorder %s76, %s77
      %p91 = scmp.eq.s32.totalorder %s22, 3
      %p92 = por %p90, %p91
      %p94 = scmp.ne.s32.totalorder %s77, %s93
      %p95 = scmp.eq.s32.totalorder %s22, 0
      %p96 = por %p94, %p95
      %s97 = ssub.s32 %s16, %s23
      %p98 = scmp.eq.s32.totalorder %s97, 0
      %s100 = sadd.s32 %s99, 1
      %s101 = scalar_select %p98, %s99, %s100
      %p104 = pneg %p98
      %p105 = scmp.eq.s32.totalorder %s16, 3
      %p106 = por %p104, %p105
      %p107 = scmp.ne.s32.totalorder %s99, %s102
      %p108 = scmp.eq.s32.totalorder %s16, 0
      %p109 = por %p107, %p108
      %p110 = scmp.ne.s32.totalorder %s99, %s102
      %p111 = scmp.eq.s32.totalorder %s21, 3
      %p112 = por %p110, %p111
      %p113 = scmp.ne.s32.totalorder %s102, %s103
      %p114 = scmp.eq.s32.totalorder %s21, 0
      %p115 = por %p113, %p114
      %p116 = scmp.ne.s32.totalorder %s102, %s103
      %p117 = scmp.eq.s32.totalorder %s22, 3
      %p118 = por %p116, %p117
      %p120 = scmp.ne.s32.totalorder %s103, %s119
      %p121 = scmp.eq.s32.totalorder %s22, 0
      %p122 = por %p120, %p121
      %s123 = ssub.s32 %s16, %s23
      %p124 = scmp.eq.s32.totalorder %s123, 0
      %s126 = sadd.s32 %s125, 1
      %s127 = scalar_select %p124, %s125, %s126
      %p130 = pneg %p124
      %p131 = scmp.eq.s32.totalorder %s16, 3
      %p132 = por %p130, %p131
      %p133 = scmp.ne.s32.totalorder %s125, %s128
      %p134 = scmp.eq.s32.totalorder %s16, 0
      %p135 = por %p133, %p134
      %p136 = scmp.ne.s32.totalorder %s125, %s128
      %p137 = scmp.eq.s32.totalorder %s21, 3
      %p138 = por %p136, %p137
      %p139 = scmp.ne.s32.totalorder %s128, %s129
      %p140 = scmp.eq.s32.totalorder %s21, 0
      %p141 = por %p139, %p140
      %p142 = scmp.ne.s32.totalorder %s128, %s129
      %p143 = scmp.eq.s32.totalorder %s22, 3
      %p144 = por %p142, %p143
      %p146 = scmp.ne.s32.totalorder %s129, %s145
      %p147 = scmp.eq.s32.totalorder %s22, 0
      %p148 = por %p146, %p147
      %s149 = ssub.s32 %s16, %s23
      %p150 = scmp.eq.s32.totalorder %s149, 0
      %s152 = sadd.s32 %s151, 1
      %s153 = scalar_select %p150, %s151, %s152
      %p156 = pneg %p150
      %p157 = scmp.eq.s32.totalorder %s16, 3
      %p158 = por %p156, %p157
      %p159 = scmp.ne.s32.totalorder %s151, %s154
      %p160 = scmp.eq.s32.totalorder %s16, 0
      %p161 = por %p159, %p160
      %p162 = scmp.ne.s32.totalorder %s151, %s154
      %p163 = scmp.eq.s32.totalorder %s21, 3
      %p164 = por %p162, %p163
      %p165 = scmp.ne.s32.totalorder %s154, %s155
      %p166 = scmp.eq.s32.totalorder %s21, 0
      %p167 = por %p165, %p166
      %p168 = scmp.ne.s32.totalorder %s154, %s155
      %p169 = scmp.eq.s32.totalorder %s22, 3
      %p170 = por %p168, %p169
      %p172 = scmp.ne.s32.totalorder %s155, %s171
      %p173 = scmp.eq.s32.totalorder %s22, 0
      %p174 = por %p172, %p173
      %s176 = sadd.s32 %s175, 1
      %p179 = scmp.eq.s32.totalorder %s16, 3
      %p180 = scmp.ne.s32.totalorder %s175, %s177
      %p181 = scmp.eq.s32.totalorder %s16, 0
      %p182 = por %p180, %p181
      %p183 = scmp.ne.s32.totalorder %s175, %s177
      %p184 = scmp.eq.s32.totalorder %s21, 3
      %p185 = por %p183, %p184
      %p186 = scmp.ne.s32.totalorder %s177, %s178
      %p187 = scmp.eq.s32.totalorder %s21, 0
      %p188 = por %p186, %p187
      %p189 = scmp.ne.s32.totalorder %s177, %s178
      %p190 = scmp.eq.s32.totalorder %s22, 3
      %p191 = por %p189, %p190
      %p193 = scmp.ne.s32.totalorder %s178, %s192
      %p194 = scmp.eq.s32.totalorder %s22, 0
      %p195 = por %p193, %p194
      %s197 = sadd.s32 %s196, 1
      %p200 = scmp.eq.s32.totalorder %s16, 3
      %p201 = scmp.ne.s32.totalorder %s196, %s198
      %p202 = scmp.eq.s32.totalorder %s16, 0
      %p203 = por %p201, %p202
      %p204 = scmp.ne.s32.totalorder %s196, %s198
      %p205 = scmp.eq.s32.totalorder %s21, 3
      %p206 = por %p204, %p205
      %p207 = scmp.ne.s32.totalorder %s198, %s199
      %p208 = scmp.eq.s32.totalorder %s21, 0
      %p209 = por %p207, %p208
      %p210 = scmp.ne.s32.totalorder %s198, %s199
      %p211 = scmp.eq.s32.totalorder %s22, 3
      %p212 = por %p210, %p211
      %p214 = scmp.ne.s32.totalorder %s199, %s213
      %p215 = scmp.eq.s32.totalorder %s22, 0
      %p216 = por %p214, %p215
      %s218 = sadd.s32 %s217, 1
      %p221 = scmp.eq.s32.totalorder %s16, 3
      %p222 = scmp.ne.s32.totalorder %s217, %s219
      %p223 = scmp.eq.s32.totalorder %s16, 0
      %p224 = por %p222, %p223
      %p225 = scmp.ne.s32.totalorder %s217, %s219
      %p226 = scmp.eq.s32.totalorder %s21, 3
      %p227 = por %p225, %p226
      %p228 = scmp.ne.s32.totalorder %s219, %s220
      %p229 = scmp.eq.s32.totalorder %s21, 0
      %p230 = por %p228, %p229
      %p231 = scmp.ne.s32.totalorder %s219, %s220
      %p232 = scmp.eq.s32.totalorder %s22, 3
      %p233 = por %p231, %p232
      %p235 = scmp.ne.s32.totalorder %s220, %s234
      %p236 = scmp.eq.s32.totalorder %s22, 0
      %p237 = por %p235, %p236
      %s238 = ssub.s32 %s16, %s23
      %p239 = scmp.eq.s32.totalorder %s238, 0
      %s241 = sadd.s32 %s240, 1
      %s242 = scalar_select %p239, %s240, %s241
      %p245 = pneg %p239
      %p246 = scmp.eq.s32.totalorder %s16, 3
      %p247 = por %p245, %p246
      %p248 = scmp.ne.s32.totalorder %s240, %s243
      %p249 = scmp.eq.s32.totalorder %s16, 0
      %p250 = por %p248, %p249
      %p251 = scmp.ne.s32.totalorder %s240, %s243
      %p252 = scmp.eq.s32.totalorder %s21, 3
      %p253 = por %p251, %p252
      %p254 = scmp.ne.s32.totalorder %s243, %s244
      %p255 = scmp.eq.s32.totalorder %s21, 0
      %p256 = por %p254, %p255
      %p257 = scmp.ne.s32.totalorder %s243, %s244
      %p258 = scmp.eq.s32.totalorder %s22, 3
      %p259 = por %p257, %p258
      %p261 = scmp.ne.s32.totalorder %s244, %s260
      %p262 = scmp.eq.s32.totalorder %s22, 0
      %p263 = por %p261, %p262
      %p264 = scmp.le.s32.totalorder 1, %s16
      %p265 = scmp.lt.s32.totalorder %s16, 5
      %p266 = pnand %p264, %p265
      %p267 = pneg %p266
      // Predicated region
      $region9: #{_sphnca_batched.1} parent=5 // pred_check
        _
      $region10: #{_sphnca_batched.1} parent=5 // pred_check_branch
        %269 = sbr.rel (%p266) target = $region12
      $region11: #{_sphnca_batched.1} parent=5 // pred_region
        %s270 = ssub.s32 %s16, 1
        // Predicated region
        $region13: #{_sphnca_batched.1} parent=11 // pred_check
          %p271 = pneg %p37
        $region14: #{_sphnca_batched.1} parent=11 // pred_check_branch
          %273 = sbr.rel (%p271) target = $region16
        $region15: #{_sphnca_batched.1} parent=11 // pred_region
          %s275 = ssub.s32 16, 16
          %276 = vsyncadd [#allocation7], %s275
          %s278 = sshll.u32 %s0, 4
          %s279 = int_to_ptr.vmem [resolvable:$true] %s278
          %281 = dma.vmem_to_smem %s279, 16, [#allocation6], [#allocation7]
        $region16: #{_sphnca_batched.1} parent=11 // pred_fallthru
          _
        // Predicated region
        $region17: #{_sphnca_batched.1} parent=11 // pred_check
          %p282 = pneg %p188
        $region18: #{_sphnca_batched.1} parent=11 // pred_check_branch
          %284 = sbr.rel (%p282) target = $region20
        $region19: #{_sphnca_batched.1} parent=11 // pred_region
          _
        $region20: #{_sphnca_batched.1} parent=11 // pred_fallthru
          _
        // Predicated region
        $region21: #{_sphnca_batched.1} parent=11 // pred_check
          %p285 = pneg %p209
        $region22: #{_sphnca_batched.1} parent=11 // pred_check_branch
          %287 = sbr.rel (%p285) target = $region24
        $region23: #{_sphnca_batched.1} parent=11 // pred_region
          _
        $region24: #{_sphnca_batched.1} parent=11 // pred_fallthru
          _
        // Predicated region
        $region25: #{_sphnca_batched.1} parent=11 // pred_check
          %p288 = pneg %p230
        $region26: #{_sphnca_batched.1} parent=11 // pred_check_branch
          %290 = sbr.rel (%p288) target = $region28
        $region27: #{_sphnca_batched.1} parent=11 // pred_region
          _
        $region28: #{_sphnca_batched.1} parent=11 // pred_fallthru
          _
      $region12: #{_sphnca_batched.1} parent=5 // pred_fallthru
        _
      %p291 = scmp.lt.s32.totalorder %s16, 4
      // Predicated region
      $region29: #{_sphnca_batched.1} parent=5 // pred_check
        %p292 = pneg %p291
      $region30: #{_sphnca_batched.1} parent=5 // pred_check_branch
        %294 = sbr.rel (%p292) target = $region32
      $region31: #{_sphnca_batched.1} parent=5 // pred_region
        // Predicated region
        $region33: #{_sphnca_batched.1} parent=31 // pred_check
          %p295 = pneg %p57
        $region34: #{_sphnca_batched.1} parent=31 // pred_check_branch
          %297 = sbr.rel (%p295) target = $region36
        $region35: #{_sphnca_batched.1} parent=31 // pred_region
          %p298 = scmp.lt.s32.totalorder %s16, 3
          %s299 = scalar_select %p298, %s16, 3
          %s300 = smul.addr %s299, 16
          %s301 = smul.addr %s300, 8
          %s302 = scalar_lea.vmem %s1, %s301
        $region36: #{_sphnca_batched.1} parent=31 // pred_fallthru
          _
        // Predicated region
        $region37: #{_sphnca_batched.1} parent=31 // pred_check
          %p303 = pneg %p83
        $region38: #{_sphnca_batched.1} parent=31 // pred_check_branch
          %305 = sbr.rel (%p303) target = $region40
        $region39: #{_sphnca_batched.1} parent=31 // pred_region
          %p306 = scmp.lt.s32.totalorder %s16, 3
          %s307 = scalar_select %p306, %s16, 3
          %s308 = smul.addr %s307, 2
          %s309 = scalar_lea.vmem %s2, %s308
        $region40: #{_sphnca_batched.1} parent=31 // pred_fallthru
          _
        // Predicated region
        $region41: #{_sphnca_batched.1} parent=31 // pred_check
          %p310 = pneg %p109
        $region42: #{_sphnca_batched.1} parent=31 // pred_check_branch
          %312 = sbr.rel (%p310) target = $region44
        $region43: #{_sphnca_batched.1} parent=31 // pred_region
          %p313 = scmp.lt.s32.totalorder %s16, 3
          %s314 = scalar_select %p313, %s16, 3
          %s315 = smul.addr %s314, 16
          %s316 = smul.addr %s315, 8
          %s317 = scalar_lea.vmem %s3, %s316
        $region44: #{_sphnca_batched.1} parent=31 // pred_fallthru
          _
        // Predicated region
        $region45: #{_sphnca_batched.1} parent=31 // pred_check
          %p318 = pneg %p135
        $region46: #{_sphnca_batched.1} parent=31 // pred_check_branch
          %320 = sbr.rel (%p318) target = $region48
        $region47: #{_sphnca_batched.1} parent=31 // pred_region
          %p321 = scmp.lt.s32.totalorder %s16, 3
          %s322 = scalar_select %p321, %s16, 3
          %s323 = smul.addr %s322, 8
          %s324 = scalar_lea.vmem %s4, %s323
        $region48: #{_sphnca_batched.1} parent=31 // pred_fallthru
          _
        // Predicated region
        $region49: #{_sphnca_batched.1} parent=31 // pred_check
          %p325 = pneg %p161
        $region50: #{_sphnca_batched.1} parent=31 // pred_check_branch
          %327 = sbr.rel (%p325) target = $region52
        $region51: #{_sphnca_batched.1} parent=31 // pred_region
          %p328 = scmp.lt.s32.totalorder %s16, 3
          %s329 = scalar_select %p328, %s16, 3
          %s330 = scalar_lea.vmem %s5, %s329
        $region52: #{_sphnca_batched.1} parent=31 // pred_fallthru
          _
      $region32: #{_sphnca_batched.1} parent=5 // pred_fallthru
        _
      %p331 = scmp.le.s32.totalorder 1, %s16
      %p332 = scmp.lt.s32.totalorder %s16, 5
      %p333 = pnand %p331, %p332
      %p334 = pneg %p333
      // Predicated region
      $region53: #{_sphnca_batched.1} parent=5 // pred_check
        _
      $region54: #{_sphnca_batched.1} parent=5 // pred_check_branch
        %336 = sbr.rel (%p333) target = $region56
      $region55: #{_sphnca_batched.1} parent=5 // pred_region
        %s337 = ssub.s32 %s16, 1
        // Predicated region
        $region57: #{_sphnca_batched.1} parent=55 // pred_check
          %p338 = pneg %p37
        $region58: #{_sphnca_batched.1} parent=55 // pred_check_branch
          %340 = sbr.rel (%p338) target = $region60
        $region59: #{_sphnca_batched.1} parent=55 // pred_region
          %341 = dma.done [#allocation7], 16
        $region60: #{_sphnca_batched.1} parent=55 // pred_fallthru
          _
        %342 = sfence
        %p343 = pneg %p37
        %p344 = pneg %p34
        %p345 = scmp.lt.s32.totalorder %s21, 3
        %s346 = scalar_select %p345, %s21, 3
        %s347 = smul.addr %s346, 16
        %s348 = smul.addr %s347, 8
        %s349 = scalar_lea.vmem %s1, %s348
        %p350 = pneg %p63
        %p351 = pneg %p60
        %p352 = scmp.lt.s32.totalorder %s21, 3
        %s353 = scalar_select %p352, %s21, 3
        %s354 = smul.addr %s353, 2
        %s355 = scalar_lea.vmem %s2, %s354
        %p356 = pneg %p89
        %p357 = pneg %p86
        %p358 = scmp.lt.s32.totalorder %s21, 3
        %s359 = scalar_select %p358, %s21, 3
        %s360 = smul.addr %s359, 16
        %s361 = smul.addr %s360, 8
        %s362 = scalar_lea.vmem %s3, %s361
        %p363 = pneg %p115
        %p364 = pneg %p112
        %p365 = scmp.lt.s32.totalorder %s21, 3
        %s366 = scalar_select %p365, %s21, 3
        %s367 = smul.addr %s366, 8
        %s368 = scalar_lea.vmem %s4, %s367
        %p369 = pneg %p141
        %p370 = pneg %p138
        %p371 = scmp.lt.s32.totalorder %s21, 3
        %s372 = scalar_select %p371, %s21, 3
        %s373 = scalar_lea.vmem %s5, %s372
        %p374 = pneg %p167
        %p375 = pneg %p164
        %p376 = pneg %p188
        %p377 = pneg %p185
        %p378 = pneg %p209
        %p379 = pneg %p206
        %p380 = pneg %p230
        %p381 = pneg %p227
        %p382 = pneg %p256
        %p383 = pneg %p253
        %p384 = scmp.lt.s32.totalorder %s21, 3
        %s385 = scalar_select %p384, %s21, 3
        %s386 = smul.addr %s385, 8
        %s387 = scalar_lea.vmem %s9, %s386
        %p388 = scmp.lt.s32.totalorder %s21, 3
        %s389 = scalar_select %p388, %s21, 3
        %s390 = smul.addr %s389, 16
        %s391 = smul.addr %s390, 8
        %s392 = scalar_lea.vmem %s1, %s391
        %p393 = scmp.lt.s32.totalorder %s21, 3
        %s394 = scalar_select %p393, %s21, 3
        %s395 = smul.addr %s394, 2
        %s396 = scalar_lea.vmem %s2, %s395
        %p397 = scmp.lt.s32.totalorder %s21, 3
        %s398 = scalar_select %p397, %s21, 3
        %s399 = smul.addr %s398, 16
        %s400 = smul.addr %s399, 8
        %s401 = scalar_lea.vmem %s3, %s400
        %p402 = scmp.lt.s32.totalorder %s21, 3
        %s403 = scalar_select %p402, %s21, 3
        %s404 = smul.addr %s403, 8
        %s405 = scalar_lea.vmem %s4, %s404
        %p406 = scmp.lt.s32.totalorder %s21, 3
        %s407 = scalar_select %p406, %s21, 3
        %s408 = scalar_lea.vmem %s5, %s407
        %p409 = scmp.lt.s32.totalorder %s21, 3
        %s410 = scalar_select %p409, %s21, 3
        %s411 = smul.addr %s410, 8
        %s412 = scalar_lea.vmem %s9, %s411
        %s415 = sld [smem:[#allocation6]]
        %s416 = sld [smem:[#allocation6 + $0x1]]
        %s417 = smul.f32 %s415, %s415
        %v418 = vstv %s417
        %v419 = vrcp.pop %v418
        %s420 = vtos %v419
        %s421 = smul.f32 %s420, -2.0
        %v422 = vld [vmem:[%s392] sm:$0xff]
        %v423 = vld [vmem:[%s392 + $0x8] sm:$0xff]
        %v424 = vld [vmem:[%s392 + $0x10] sm:$0xff]
        %v425 = vld [vmem:[%s392 + $0x18] sm:$0xff]
        %v426 = vld [vmem:[%s392 + $0x20] sm:$0xff]
        %v427 = vld [vmem:[%s392 + $0x28] sm:$0xff]
        %v428 = vld [vmem:[%s392 + $0x30] sm:$0xff]
        %v429 = vld [vmem:[%s392 + $0x38] sm:$0xff]
        %v430 = vld [vmem:[%s392 + $0x40] sm:$0xff]
        %v431 = vld [vmem:[%s392 + $0x48] sm:$0xff]
        %v432 = vld [vmem:[%s392 + $0x50] sm:$0xff]
        %v433 = vld [vmem:[%s392 + $0x58] sm:$0xff]
        %v434 = vld [vmem:[%s392 + $0x60] sm:$0xff]
        %v435 = vld [vmem:[%s392 + $0x68] sm:$0xff]
        %v436 = vld [vmem:[%s392 + $0x70] sm:$0xff]
        %v437 = vld [vmem:[%s392 + $0x78] sm:$0xff]
        %v438 = vld [vmem:[%s396] sm:$0x1]
        %v439 = vld [vmem:[%s396 + $0x1] sm:$0x1]
        %v440 = vld [vmem:[%s401] sm:$0xff]
        %v441 = vld [vmem:[%s401 + $0x8] sm:$0xff]
        %v442 = vld [vmem:[%s401 + $0x10] sm:$0xff]
        %v443 = vld [vmem:[%s401 + $0x18] sm:$0xff]
        %v444 = vld [vmem:[%s401 + $0x20] sm:$0xff]
        %v445 = vld [vmem:[%s401 + $0x28] sm:$0xff]
        %v446 = vld [vmem:[%s401 + $0x30] sm:$0xff]
        %v447 = vld [vmem:[%s401 + $0x38] sm:$0xff]
        %v448 = vld [vmem:[%s401 + $0x40] sm:$0xff]
        %v449 = vld [vmem:[%s401 + $0x48] sm:$0xff]
        %v450 = vld [vmem:[%s401 + $0x50] sm:$0xff]
        %v451 = vld [vmem:[%s401 + $0x58] sm:$0xff]
        %v452 = vld [vmem:[%s401 + $0x60] sm:$0xff]
        %v453 = vld [vmem:[%s401 + $0x68] sm:$0xff]
        %v454 = vld [vmem:[%s401 + $0x70] sm:$0xff]
        %v455 = vld [vmem:[%s401 + $0x78] sm:$0xff]
        %v456 = vlaneseq
        %v457 = vshrl.u32 %v456, 7
        %v458 = vsub.s32 0, %v457
        %v459 = vrot.slane %v438, %v458
        %461 = vset.pattern.permute.xlu0 0
        %462 = vperm.xlu0 %461, %v422
        %v463 = vpop.permute.xlu0 %462
        %466 = vset.pattern.permute.xlu0 0
        %467 = vperm.xlu0 %466, %v423
        %v468 = vpop.permute.xlu0 %467
        %471 = vset.pattern.permute.xlu0 0
        %472 = vperm.xlu0 %471, %v424
        %v473 = vpop.permute.xlu0 %472
        %476 = vset.pattern.permute.xlu0 0
        %477 = vperm.xlu0 %476, %v425
        %v478 = vpop.permute.xlu0 %477
        %481 = vset.pattern.permute.xlu0 0
        %482 = vperm.xlu0 %481, %v426
        %v483 = vpop.permute.xlu0 %482
        %486 = vset.pattern.permute.xlu0 0
        %487 = vperm.xlu0 %486, %v427
        %v488 = vpop.permute.xlu0 %487
        %491 = vset.pattern.permute.xlu0 0
        %492 = vperm.xlu0 %491, %v428
        %v493 = vpop.permute.xlu0 %492
        %496 = vset.pattern.permute.xlu0 0
        %497 = vperm.xlu0 %496, %v429
        %v498 = vpop.permute.xlu0 %497
        %501 = vset.pattern.permute.xlu0 0
        %502 = vperm.xlu0 %501, %v430
        %v503 = vpop.permute.xlu0 %502
        %506 = vset.pattern.permute.xlu0 0
        %507 = vperm.xlu0 %506, %v431
        %v508 = vpop.permute.xlu0 %507
        %511 = vset.pattern.permute.xlu0 0
        %512 = vperm.xlu0 %511, %v432
        %v513 = vpop.permute.xlu0 %512
        %516 = vset.pattern.permute.xlu0 0
        %517 = vperm.xlu0 %516, %v433
        %v518 = vpop.permute.xlu0 %517
        %521 = vset.pattern.permute.xlu0 0
        %522 = vperm.xlu0 %521, %v434
        %v523 = vpop.permute.xlu0 %522
        %526 = vset.pattern.permute.xlu0 0
        %527 = vperm.xlu0 %526, %v435
        %v528 = vpop.permute.xlu0 %527
        %531 = vset.pattern.permute.xlu0 0
        %532 = vperm.xlu0 %531, %v436
        %v533 = vpop.permute.xlu0 %532
        %536 = vset.pattern.permute.xlu0 0
        %537 = vperm.xlu0 %536, %v437
        %v538 = vpop.permute.xlu0 %537
        %v540 = vsub.f32 %v459, %v463
        %v541 = vsub.f32 %v459, %v468
        %v542 = vsub.f32 %v459, %v473
        %v543 = vsub.f32 %v459, %v478
        %v544 = vsub.f32 %v459, %v483
        %v545 = vsub.f32 %v459, %v488
        %v546 = vsub.f32 %v459, %v493
        %v547 = vsub.f32 %v459, %v498
        %v548 = vsub.f32 %v459, %v503
        %v549 = vsub.f32 %v459, %v508
        %v550 = vsub.f32 %v459, %v513
        %v551 = vsub.f32 %v459, %v518
        %v552 = vsub.f32 %v459, %v523
        %v553 = vsub.f32 %v459, %v528
        %v554 = vsub.f32 %v459, %v533
        %v555 = vsub.f32 %v459, %v538
        %v556 = vlaneseq
        %v557 = vshrl.u32 %v556, 7
        %v558 = vsub.s32 0, %v557
        %v559 = vrot.slane %v439, %v558
        %560 = vset.pattern.permute.xlu0 1
        %561 = vperm.xlu0 %560, %v422
        %v562 = vpop.permute.xlu0 %561
        %564 = vset.pattern.permute.xlu0 1
        %565 = vperm.xlu0 %564, %v423
        %v566 = vpop.permute.xlu0 %565
        %568 = vset.pattern.permute.xlu0 1
        %569 = vperm.xlu0 %568, %v424
        %v570 = vpop.permute.xlu0 %569
        %572 = vset.pattern.permute.xlu0 1
        %573 = vperm.xlu0 %572, %v425
        %v574 = vpop.permute.xlu0 %573
        %576 = vset.pattern.permute.xlu0 1
        %577 = vperm.xlu0 %576, %v426
        %v578 = vpop.permute.xlu0 %577
        %580 = vset.pattern.permute.xlu0 1
        %581 = vperm.xlu0 %580, %v427
        %v582 = vpop.permute.xlu0 %581
        %584 = vset.pattern.permute.xlu0 1
        %585 = vperm.xlu0 %584, %v428
        %v586 = vpop.permute.xlu0 %585
        %588 = vset.pattern.permute.xlu0 1
        %589 = vperm.xlu0 %588, %v429
        %v590 = vpop.permute.xlu0 %589
        %592 = vset.pattern.permute.xlu0 1
        %593 = vperm.xlu0 %592, %v430
        %v594 = vpop.permute.xlu0 %593
        %596 = vset.pattern.permute.xlu0 1
        %597 = vperm.xlu0 %596, %v431
        %v598 = vpop.permute.xlu0 %597
        %600 = vset.pattern.permute.xlu0 1
        %601 = vperm.xlu0 %600, %v432
        %v602 = vpop.permute.xlu0 %601
        %604 = vset.pattern.permute.xlu0 1
        %605 = vperm.xlu0 %604, %v433
        %v606 = vpop.permute.xlu0 %605
        %608 = vset.pattern.permute.xlu0 1
        %609 = vperm.xlu0 %608, %v434
        %v610 = vpop.permute.xlu0 %609
        %612 = vset.pattern.permute.xlu0 1
        %613 = vperm.xlu0 %612, %v435
        %v614 = vpop.permute.xlu0 %613
        %616 = vset.pattern.permute.xlu0 1
        %617 = vperm.xlu0 %616, %v436
        %v618 = vpop.permute.xlu0 %617
        %620 = vset.pattern.permute.xlu0 1
        %621 = vperm.xlu0 %620, %v437
        %v622 = vpop.permute.xlu0 %621
        %v624 = vsub.f32 %v559, %v562
        %v625 = vsub.f32 %v559, %v566
        %v626 = vsub.f32 %v559, %v570
        %v627 = vsub.f32 %v559, %v574
        %v628 = vsub.f32 %v559, %v578
        %v629 = vsub.f32 %v559, %v582
        %v630 = vsub.f32 %v559, %v586
        %v631 = vsub.f32 %v559, %v590
        %v632 = vsub.f32 %v559, %v594
        %v633 = vsub.f32 %v559, %v598
        %v634 = vsub.f32 %v559, %v602
        %v635 = vsub.f32 %v559, %v606
        %v636 = vsub.f32 %v559, %v610
        %v637 = vsub.f32 %v559, %v614
        %v638 = vsub.f32 %v559, %v618
        %v639 = vsub.f32 %v559, %v622
        %v640 = vmul.f32 %v540, %v540
        %v641 = vmul.f32 %v541, %v541
        %v642 = vmul.f32 %v542, %v542
        %v643 = vmul.f32 %v543, %v543
        %v644 = vmul.f32 %v544, %v544
        %v645 = vmul.f32 %v545, %v545
        %v646 = vmul.f32 %v546, %v546
        %v647 = vmul.f32 %v547, %v547
        %v648 = vmul.f32 %v548, %v548
        %v649 = vmul.f32 %v549, %v549
        %v650 = vmul.f32 %v550, %v550
        %v651 = vmul.f32 %v551, %v551
        %v652 = vmul.f32 %v552, %v552
        %v653 = vmul.f32 %v553, %v553
        %v654 = vmul.f32 %v554, %v554
        %v655 = vmul.f32 %v555, %v555
        %v656 = vmul.f32 %v624, %v624
        %v657 = vmul.f32 %v625, %v625
        %v658 = vmul.f32 %v626, %v626
        %v659 = vmul.f32 %v627, %v627
        %v660 = vmul.f32 %v628, %v628
        %v661 = vmul.f32 %v629, %v629
        %v662 = vmul.f32 %v630, %v630
        %v663 = vmul.f32 %v631, %v631
        %v664 = vmul.f32 %v632, %v632
        %v665 = vmul.f32 %v633, %v633
        %v666 = vmul.f32 %v634, %v634
        %v667 = vmul.f32 %v635, %v635
        %v668 = vmul.f32 %v636, %v636
        %v669 = vmul.f32 %v637, %v637
        %v670 = vmul.f32 %v638, %v638
        %v671 = vmul.f32 %v639, %v639
        %v672 = vadd.f32 %v640, %v656
        %v673 = vadd.f32 %v641, %v657
        %v674 = vadd.f32 %v642, %v658
        %v675 = vadd.f32 %v643, %v659
        %v676 = vadd.f32 %v644, %v660
        %v677 = vadd.f32 %v645, %v661
        %v678 = vadd.f32 %v646, %v662
        %v679 = vadd.f32 %v647, %v663
        %v680 = vadd.f32 %v648, %v664
        %v681 = vadd.f32 %v649, %v665
        %v682 = vadd.f32 %v650, %v666
        %v683 = vadd.f32 %v651, %v667
        %v684 = vadd.f32 %v652, %v668
        %v685 = vadd.f32 %v653, %v669
        %v686 = vadd.f32 %v654, %v670
        %v687 = vadd.f32 %v655, %v671
        %v688 = vsub.f32 0.0, %v672
        %v689 = vsub.f32 0.0, %v673
        %v690 = vsub.f32 0.0, %v674
        %v691 = vsub.f32 0.0, %v675
        %v692 = vsub.f32 0.0, %v676
        %v693 = vsub.f32 0.0, %v677
        %v694 = vsub.f32 0.0, %v678
        %v695 = vsub.f32 0.0, %v679
        %v696 = vsub.f32 0.0, %v680
        %v697 = vsub.f32 0.0, %v681
        %v698 = vsub.f32 0.0, %v682
        %v699 = vsub.f32 0.0, %v683
        %v700 = vsub.f32 0.0, %v684
        %v701 = vsub.f32 0.0, %v685
        %v702 = vsub.f32 0.0, %v686
        %v703 = vsub.f32 0.0, %v687
        %v704 = vstv %s420
        %v705 = vmul.f32 %v688, %v704
        %v706 = vmul.f32 %v689, %v704
        %v707 = vmul.f32 %v690, %v704
        %v708 = vmul.f32 %v691, %v704
        %v709 = vmul.f32 %v692, %v704
        %v710 = vmul.f32 %v693, %v704
        %v711 = vmul.f32 %v694, %v704
        %v712 = vmul.f32 %v695, %v704
        %v713 = vmul.f32 %v696, %v704
        %v714 = vmul.f32 %v697, %v704
        %v715 = vmul.f32 %v698, %v704
        %v716 = vmul.f32 %v699, %v704
        %v717 = vmul.f32 %v700, %v704
        %v718 = vmul.f32 %v701, %v704
        %v719 = vmul.f32 %v702, %v704
        %v720 = vmul.f32 %v703, %v704
        %v721 = vmul.f32 %v705, 1.442695
        %v722 = vpow.pop %v721
        %v723 = vmul.f32 %v706, 1.442695
        %v724 = vpow.pop %v723
        %v725 = vmul.f32 %v707, 1.442695
        %v726 = vpow.pop %v725
        %v727 = vmul.f32 %v708, 1.442695
        %v728 = vpow.pop %v727
        %v729 = vmul.f32 %v709, 1.442695
        %v730 = vpow.pop %v729
        %v731 = vmul.f32 %v710, 1.442695
        %v732 = vpow.pop %v731
        %v733 = vmul.f32 %v711, 1.442695
        %v734 = vpow.pop %v733
        %v735 = vmul.f32 %v712, 1.442695
        %v736 = vpow.pop %v735
        %v737 = vmul.f32 %v713, 1.442695
        %v738 = vpow.pop %v737
        %v739 = vmul.f32 %v714, 1.442695
        %v740 = vpow.pop %v739
        %v741 = vmul.f32 %v715, 1.442695
        %v742 = vpow.pop %v741
        %v743 = vmul.f32 %v716, 1.442695
        %v744 = vpow.pop %v743
        %v745 = vmul.f32 %v717, 1.442695
        %v746 = vpow.pop %v745
        %v747 = vmul.f32 %v718, 1.442695
        %v748 = vpow.pop %v747
        %v749 = vmul.f32 %v719, 1.442695
        %v750 = vpow.pop %v749
        %v751 = vmul.f32 %v720, 1.442695
        %v752 = vpow.pop %v751
        %754 = vset.pattern.permute.xlu0 0
        %755 = vperm.xlu0 %754, %v440
        %v756 = vpop.permute.xlu0 %755
        %759 = vset.pattern.permute.xlu0 0
        %760 = vperm.xlu0 %759, %v441
        %v761 = vpop.permute.xlu0 %760
        %764 = vset.pattern.permute.xlu0 0
        %765 = vperm.xlu0 %764, %v442
        %v766 = vpop.permute.xlu0 %765
        %769 = vset.pattern.permute.xlu0 0
        %770 = vperm.xlu0 %769, %v443
        %v771 = vpop.permute.xlu0 %770
        %774 = vset.pattern.permute.xlu0 0
        %775 = vperm.xlu0 %774, %v444
        %v776 = vpop.permute.xlu0 %775
        %779 = vset.pattern.permute.xlu0 0
        %780 = vperm.xlu0 %779, %v445
        %v781 = vpop.permute.xlu0 %780
        %784 = vset.pattern.permute.xlu0 0
        %785 = vperm.xlu0 %784, %v446
        %v786 = vpop.permute.xlu0 %785
        %789 = vset.pattern.permute.xlu0 0
        %790 = vperm.xlu0 %789, %v447
        %v791 = vpop.permute.xlu0 %790
        %794 = vset.pattern.permute.xlu0 0
        %795 = vperm.xlu0 %794, %v448
        %v796 = vpop.permute.xlu0 %795
        %799 = vset.pattern.permute.xlu0 0
        %800 = vperm.xlu0 %799, %v449
        %v801 = vpop.permute.xlu0 %800
        %804 = vset.pattern.permute.xlu0 0
        %805 = vperm.xlu0 %804, %v450
        %v806 = vpop.permute.xlu0 %805
        %809 = vset.pattern.permute.xlu0 0
        %810 = vperm.xlu0 %809, %v451
        %v811 = vpop.permute.xlu0 %810
        %814 = vset.pattern.permute.xlu0 0
        %815 = vperm.xlu0 %814, %v452
        %v816 = vpop.permute.xlu0 %815
        %819 = vset.pattern.permute.xlu0 0
        %820 = vperm.xlu0 %819, %v453
        %v821 = vpop.permute.xlu0 %820
        %824 = vset.pattern.permute.xlu0 0
        %825 = vperm.xlu0 %824, %v454
        %v826 = vpop.permute.xlu0 %825
        %829 = vset.pattern.permute.xlu0 0
        %830 = vperm.xlu0 %829, %v455
        %v831 = vpop.permute.xlu0 %830
        %v833 = vmul.f32 %v722, %v756
        %v834 = vmul.f32 %v724, %v761
        %v835 = vmul.f32 %v726, %v766
        %v836 = vmul.f32 %v728, %v771
        %v837 = vmul.f32 %v730, %v776
        %v838 = vmul.f32 %v732, %v781
        %v839 = vmul.f32 %v734, %v786
        %v840 = vmul.f32 %v736, %v791
        %v841 = vmul.f32 %v738, %v796
        %v842 = vmul.f32 %v740, %v801
        %v843 = vmul.f32 %v742, %v806
        %v844 = vmul.f32 %v744, %v811
        %v845 = vmul.f32 %v746, %v816
        %v846 = vmul.f32 %v748, %v821
        %v847 = vmul.f32 %v750, %v826
        %v848 = vmul.f32 %v752, %v831
        %849 = vst [vmem:[#allocation3] sm:$0xff] %v833
        %850 = vst [vmem:[#allocation3 + $0x8] sm:$0xff] %v834
        %851 = vst [vmem:[#allocation3 + $0x10] sm:$0xff] %v835
        %852 = vst [vmem:[#allocation3 + $0x18] sm:$0xff] %v836
        %853 = vst [vmem:[#allocation3 + $0x20] sm:$0xff] %v837
        %854 = vst [vmem:[#allocation3 + $0x28] sm:$0xff] %v838
        %855 = vst [vmem:[#allocation3 + $0x30] sm:$0xff] %v839
        %856 = vst [vmem:[#allocation3 + $0x38] sm:$0xff] %v840
        %857 = vst [vmem:[#allocation3 + $0x40] sm:$0xff] %v841
        %858 = vst [vmem:[#allocation3 + $0x48] sm:$0xff] %v842
        %859 = vst [vmem:[#allocation3 + $0x50] sm:$0xff] %v843
        %860 = vst [vmem:[#allocation3 + $0x58] sm:$0xff] %v844
        %861 = vst [vmem:[#allocation3 + $0x60] sm:$0xff] %v845
        %862 = vst [vmem:[#allocation3 + $0x68] sm:$0xff] %v846
        %863 = vst [vmem:[#allocation3 + $0x70] sm:$0xff] %v847
        %864 = vst [vmem:[#allocation3 + $0x78] sm:$0xff] %v848
        %v865 = vstv %s421
        %v866 = vmul.f32 %v865, %v540
        %v867 = vmul.f32 %v865, %v541
        %v868 = vmul.f32 %v865, %v542
        %v869 = vmul.f32 %v865, %v543
        %v870 = vmul.f32 %v865, %v544
        %v871 = vmul.f32 %v865, %v545
        %v872 = vmul.f32 %v865, %v546
        %v873 = vmul.f32 %v865, %v547
        %v874 = vmul.f32 %v865, %v548
        %v875 = vmul.f32 %v865, %v549
        %v876 = vmul.f32 %v865, %v550
        %v877 = vmul.f32 %v865, %v551
        %v878 = vmul.f32 %v865, %v552
        %v879 = vmul.f32 %v865, %v553
        %v880 = vmul.f32 %v865, %v554
        %v881 = vmul.f32 %v865, %v555
        %v882 = vmul.f32 %v833, %v866
        %v883 = vmul.f32 %v834, %v867
        %v884 = vmul.f32 %v835, %v868
        %v885 = vmul.f32 %v836, %v869
        %v886 = vmul.f32 %v837, %v870
        %v887 = vmul.f32 %v838, %v871
        %v888 = vmul.f32 %v839, %v872
        %v889 = vmul.f32 %v840, %v873
        %v890 = vmul.f32 %v841, %v874
        %v891 = vmul.f32 %v842, %v875
        %v892 = vmul.f32 %v843, %v876
        %v893 = vmul.f32 %v844, %v877
        %v894 = vmul.f32 %v845, %v878
        %v895 = vmul.f32 %v846, %v879
        %v896 = vmul.f32 %v847, %v880
        %v897 = vmul.f32 %v848, %v881
        %v898 = vpack.c.bf16 %v883, %v882
        %v899 = vpack.c.bf16 %v885, %v884
        %v900 = vpack.c.bf16 %v887, %v886
        %v901 = vpack.c.bf16 %v889, %v888
        %v902 = vpack.c.bf16 %v891, %v890
        %v903 = vpack.c.bf16 %v893, %v892
        %v904 = vpack.c.bf16 %v895, %v894
        %v905 = vpack.c.bf16 %v897, %v896
        %906 = vst [vmem:[#allocation2] sm:$0xff] %v898
        %907 = vst [vmem:[#allocation2 + $0x10] sm:$0xff] %v899
        %908 = vst [vmem:[#allocation2 + $0x20] sm:$0xff] %v900
        %909 = vst [vmem:[#allocation2 + $0x30] sm:$0xff] %v901
        %910 = vst [vmem:[#allocation2 + $0x40] sm:$0xff] %v902
        %911 = vst [vmem:[#allocation2 + $0x50] sm:$0xff] %v903
        %912 = vst [vmem:[#allocation2 + $0x60] sm:$0xff] %v904
        %913 = vst [vmem:[#allocation2 + $0x70] sm:$0xff] %v905
        %v914 = vmul.f32 %v865, %v624
        %v915 = vmul.f32 %v865, %v625
        %v916 = vmul.f32 %v865, %v626
        %v917 = vmul.f32 %v865, %v627
        %v918 = vmul.f32 %v865, %v628
        %v919 = vmul.f32 %v865, %v629
        %v920 = vmul.f32 %v865, %v630
        %v921 = vmul.f32 %v865, %v631
        %v922 = vmul.f32 %v865, %v632
        %v923 = vmul.f32 %v865, %v633
        %v924 = vmul.f32 %v865, %v634
        %v925 = vmul.f32 %v865, %v635
        %v926 = vmul.f32 %v865, %v636
        %v927 = vmul.f32 %v865, %v637
        %v928 = vmul.f32 %v865, %v638
        %v929 = vmul.f32 %v865, %v639
        %v930 = vmul.f32 %v833, %v914
        %v931 = vmul.f32 %v834, %v915
        %v932 = vmul.f32 %v835, %v916
        %v933 = vmul.f32 %v836, %v917
        %v934 = vmul.f32 %v837, %v918
        %v935 = vmul.f32 %v838, %v919
        %v936 = vmul.f32 %v839, %v920
        %v937 = vmul.f32 %v840, %v921
        %v938 = vmul.f32 %v841, %v922
        %v939 = vmul.f32 %v842, %v923
        %v940 = vmul.f32 %v843, %v924
        %v941 = vmul.f32 %v844, %v925
        %v942 = vmul.f32 %v845, %v926
        %v943 = vmul.f32 %v846, %v927
        %v944 = vmul.f32 %v847, %v928
        %v945 = vmul.f32 %v848, %v929
        %v946 = vpack.c.bf16 %v931, %v930
        %v947 = vpack.c.bf16 %v933, %v932
        %v948 = vpack.c.bf16 %v935, %v934
        %v949 = vpack.c.bf16 %v937, %v936
        %v950 = vpack.c.bf16 %v939, %v938
        %v951 = vpack.c.bf16 %v941, %v940
        %v952 = vpack.c.bf16 %v943, %v942
        %v953 = vpack.c.bf16 %v945, %v944
        %954 = vst [vmem:[#allocation2 + $0x8] sm:$0xff] %v946
        %955 = vst [vmem:[#allocation2 + $0x18] sm:$0xff] %v947
        %956 = vst [vmem:[#allocation2 + $0x28] sm:$0xff] %v948
        %957 = vst [vmem:[#allocation2 + $0x38] sm:$0xff] %v949
        %958 = vst [vmem:[#allocation2 + $0x48] sm:$0xff] %v950
        %959 = vst [vmem:[#allocation2 + $0x58] sm:$0xff] %v951
        %960 = vst [vmem:[#allocation2 + $0x68] sm:$0xff] %v952
        %961 = vst [vmem:[#allocation2 + $0x78] sm:$0xff] %v953
        %v962 = vld [vmem:[%s405] sm:$0xff]
        %v963 = vpack.c.bf16 %v962, %v962
        %964 = vst [vmem:[#allocation4] sm:$0xf] %v963
        %vm965 = vcmask 1044484
        %vm966 = vsmask.f32 4352
        %vm967 = vmand %vm965, %vm966
        %v968 = vld [vmem:[#allocation4] sm:$0x10]
        %v969 = vsel %vm967, 1065369472, %v968
        %970 = vst [vmem:[#allocation4] sm:$0x10] %v969
        %vm971 = vcmask 1047556
        %vm972 = vsmask.f32 7954
        %vm973 = vmand %vm971, %vm972
        %v974 = vld [vmem:[#allocation4] sm:$0xf0]
        %v975 = vsel %vm973, 0, %v974
        %976 = vst [vmem:[#allocation4] sm:$0xf0] %v975
        %v977 = vld [vmem:[#allocation4] sm:$0xff]
        %v978 = vld [vmem:[#allocation2] sm:$0xff]
        %v979 = vld [vmem:[#allocation2 + $0x8] sm:$0xff]
        %v980 = vld [vmem:[#allocation2 + $0x10] sm:$0xff]
        %v981 = vld [vmem:[#allocation2 + $0x18] sm:$0xff]
        %v982 = vld [vmem:[#allocation2 + $0x20] sm:$0xff]
        %v983 = vld [vmem:[#allocation2 + $0x28] sm:$0xff]
        %v984 = vld [vmem:[#allocation2 + $0x30] sm:$0xff]
        %v985 = vld [vmem:[#allocation2 + $0x38] sm:$0xff]
        %v986 = vld [vmem:[#allocation2 + $0x40] sm:$0xff]
        %v987 = vld [vmem:[#allocation2 + $0x48] sm:$0xff]
        %v988 = vld [vmem:[#allocation2 + $0x50] sm:$0xff]
        %v989 = vld [vmem:[#allocation2 + $0x58] sm:$0xff]
        %v990 = vld [vmem:[#allocation2 + $0x60] sm:$0xff]
        %v991 = vld [vmem:[#allocation2 + $0x68] sm:$0xff]
        %v992 = vld [vmem:[#allocation2 + $0x70] sm:$0xff]
        %v993 = vld [vmem:[#allocation2 + $0x78] sm:$0xff]
        %994 = vmatprep.subr.bf16.mxu0 %v979
        %995 = vmatpush1.bf16.msra.mxu0 %v978
        %996 = vmatprep.subr.bf16.mxu0 %v981
        %997 = vmatpush1.bf16.msra.mxu0 %v980
        %998 = vmatprep.subr.bf16.mxu0 %v983
        %999 = vmatpush1.bf16.msra.mxu0 %v982
        %1000 = vmatprep.subr.bf16.mxu0 %v985
        %1001 = vmatpush1.bf16.msra.mxu0 %v984
        %1002 = vmatprep.subr.bf16.mxu0 %v987
        %1003 = vmatpush1.bf16.msra.mxu0 %v986
        %1004 = vmatprep.subr.bf16.mxu0 %v989
        %1005 = vmatpush1.bf16.msra.mxu0 %v988
        %1006 = vmatprep.subr.bf16.mxu0 %v991
        %1007 = vmatpush1.bf16.msra.mxu0 %v990
        %1008 = vmatprep.subr.bf16.mxu0 %v993
        %1009 = vmatpush1.bf16.msra.mxu0 %v992
        %1010 = vmatprep.subr.bf16.mxu0 0
        %1011 = vmatpush1.bf16.msra.mxu0 0
        %1012 = vmatprep.subr.bf16.mxu0 0
        %1013 = vmatpush1.bf16.msra.mxu0 0
        %1014 = vmatprep.subr.bf16.mxu0 0
        %1015 = vmatpush1.bf16.msra.mxu0 0
        %1016 = vmatprep.subr.bf16.mxu0 0
        %1017 = vmatpush1.bf16.msra.mxu0 0
        %1018 = vmatprep.subr.bf16.mxu0 0
        %1019 = vmatpush1.bf16.msra.mxu0 0
        %1020 = vmatprep.subr.bf16.mxu0 0
        %1021 = vmatpush1.bf16.msra.mxu0 0
        %1022 = vmatprep.subr.bf16.mxu0 0
        %1023 = vmatpush1.bf16.msra.mxu0 0
        %1024 = vmatprep.subr.bf16.mxu0 0
        %1025 = vmatpush1.bf16.msra.mxu0 0
        %1026 = vmatprep.mubr.bf16.mxu0 0
        %1027 = vmatmul.mubr.bf16.gmra.mrb[0].mxu0 %v977
        %v1028 = vpop.f32.mrb[0].mxu0
        %v1029 = vadd.f32 0.0, %v1028
        %v1030 = vpop.f32.mrb[0].mxu0
        %v1031 = vadd.f32 0.0, %v1030
        %v1032 = vpop.f32.mrb[0].mxu0
        %v1033 = vadd.f32 0.0, %v1032
        %v1034 = vpop.f32.mrb[0].mxu0
        %v1035 = vadd.f32 0.0, %v1034
        %1036 = vdwg.mxu0
        %v1037 = vlaneseq
        %v1038 = vshrl.u32 %v1037, 7
        %v1039 = vsub.s32 0, %v1038
        %v1040 = vrot.slane %v1033, %v1039
        %v1041 = vmul.f32 %v962, %v1040
        %v1042 = vsub.f32 %v1029, %v1041
        %v1043 = vlaneseq
        %v1044 = vshrl.u32 %v1043, 7
        %v1045 = vsub.s32 0, %v1044
        %v1046 = vrot.slane %v1035, %v1045
        %v1047 = vmul.f32 %v962, %v1046
        %v1048 = vsub.f32 %v1031, %v1047
        %1049 = vst [vmem:[#allocation5] sm:$0xf] %v963
        %v1050 = vpack.c.bf16 %v1042, %v1042
        %v1052 = vrot.slane %v1050, 4
        %1054 = vst [vmem:[#allocation5] sm:$0xf0] %v1052
        %v1055 = vpack.c.bf16 %v1048, %v1048
        %1056 = vst [vmem:[#allocation5 + $0x8] sm:$0xf] %v1055
        %v1057 = vld [vmem:[#allocation5 + $0x8] sm:$0x10]
        %v1058 = vsel %vm967, 1065369472, %v1057
        %1059 = vst [vmem:[#allocation5 + $0x8] sm:$0x10] %v1058
        %v1060 = vld [vmem:[#allocation5 + $0x8] sm:$0xf0]
        %v1061 = vsel %vm973, 0, %v1060
        %1062 = vst [vmem:[#allocation5 + $0x8] sm:$0xf0] %v1061
        %v1063 = vld [vmem:[%s6] sm:$0xf]
        %v1064 = vld [vmem:[%s6 + $0x4] sm:$0xf]
        %v1065 = vld [vmem:[%s6 + $0x8] sm:$0xf]
        %v1066 = vld [vmem:[%s6 + $0xc] sm:$0xf]
        %v1067 = vld [vmem:[#allocation5] sm:$0xff]
        %v1068 = vld [vmem:[#allocation5 + $0x8] sm:$0xff]
        %v1073 = vunpack.c.l.b16 %v1063
        %v1074 = vunpack.c.l.b16 %v1064
        %v1075 = vunpack.c.l.b16 %v1065
        %v1076 = vunpack.c.l.b16 %v1066
        %v1077 = vpack.c.b16 %v1074, %v1073
        %v1078 = vpack.c.b16 %v1076, %v1075
        %vm1079 = vcmask 261120
        %v1081 = vsel %vm1079, %v1077, 0
        %v1084 = vsel %vm1079, %v1078, 0
        %1086 = vmatprep.subr.bf16.mxu0 0
        %1087 = vmatpush1.bf16.msra.mxu0 %v1067
        %1088 = vmatprep.subr.bf16.mxu0 0
        %1089 = vmatpush1.bf16.msra.mxu0 %v1068
        %1090 = vmatprep.subr.bf16.mxu0 0
        %1091 = vmatpush1.bf16.msra.mxu0 0
        %1092 = vmatprep.subr.bf16.mxu0 0
        %1093 = vmatpush1.bf16.msra.mxu0 0
        %1094 = vmatprep.subr.bf16.mxu0 0
        %1095 = vmatpush1.bf16.msra.mxu0 0
        %1096 = vmatprep.subr.bf16.mxu0 0
        %1097 = vmatpush1.bf16.msra.mxu0 0
        %1098 = vmatprep.subr.bf16.mxu0 0
        %1099 = vmatpush1.bf16.msra.mxu0 0
        %1100 = vmatprep.subr.bf16.mxu0 0
        %1101 = vmatpush1.bf16.msra.mxu0 0
        %1102 = vmatprep.subr.bf16.mxu0 0
        %1103 = vmatpush1.bf16.msra.mxu0 0
        %1104 = vmatprep.subr.bf16.mxu0 0
        %1105 = vmatpush1.bf16.msra.mxu0 0
        %1106 = vmatprep.subr.bf16.mxu0 0
        %1107 = vmatpush1.bf16.msra.mxu0 0
        %1108 = vmatprep.subr.bf16.mxu0 0
        %1109 = vmatpush1.bf16.msra.mxu0 0
        %1110 = vmatprep.subr.bf16.mxu0 0
        %1111 = vmatpush1.bf16.msra.mxu0 0
        %1112 = vmatprep.subr.bf16.mxu0 0
        %1113 = vmatpush1.bf16.msra.mxu0 0
        %1114 = vmatprep.subr.bf16.mxu0 0
        %1115 = vmatpush1.bf16.msra.mxu0 0
        %1116 = vmatprep.subr.bf16.mxu0 0
        %1117 = vmatpush1.bf16.msra.mxu0 0
        %1118 = vmatprep.mubr.bf16.mxu0 0
        %1119 = vmatmul.mubr.bf16.gmra.mrb[0].mxu0 %v1081
        %v1120 = vpop.f32.mrb[0].mxu0
        %v1121 = vadd.f32 0.0, %v1120
        %v1122 = vpop.f32.mrb[0].mxu0
        %v1123 = vpop.f32.mrb[0].mxu0
        %v1124 = vadd.f32 0.0, %v1123
        %v1125 = vpop.f32.mrb[0].mxu0
        %1126 = vmatprep.mubr.bf16.mxu0 0
        %1127 = vmatmul.mubr.bf16.gmra.mrb[0].mxu0 %v1084
        %v1128 = vpop.f32.mrb[0].mxu0
        %v1129 = vadd.f32 0.0, %v1128
        %v1130 = vpop.f32.mrb[0].mxu0
        %v1131 = vpop.f32.mrb[0].mxu0
        %v1132 = vadd.f32 0.0, %v1131
        %v1133 = vpop.f32.mrb[0].mxu0
        %1134 = vdwg.mxu0
        %v1135 = vmax.f32 %v1121, 0.0
        %v1136 = vmax.f32 %v1124, 0.0
        %v1137 = vmax.f32 %v1129, 0.0
        %v1138 = vmax.f32 %v1132, 0.0
        %v1139 = vld [vmem:[%s7] sm:$0xf]
        %v1140 = vld [vmem:[%s7 + $0x4] sm:$0xf]
        %v1141 = vld [vmem:[%s7 + $0x8] sm:$0x1]
        %v1142 = vpack.c.bf16 %v1136, %v1135
        %v1143 = vpack.c.bf16 %v1138, %v1137
        %v1144 = vld [vmem:[%s8] sm:$0xff]
        %v1145 = vld [vmem:[%s8 + $0x8] sm:$0xff]
        %v1146 = vld [vmem:[%s8 + $0x10] sm:$0x1]
        %1148 = vset.pattern.permute.xlu0 0
        %1149 = vperm.xlu0 %1148, %v1144
        %v1150 = vpop.permute.xlu0 %1149
        %1153 = vset.pattern.permute.xlu0 0
        %1154 = vperm.xlu0 %1153, %v1145
        %v1155 = vpop.permute.xlu0 %1154
        %1158 = vset.pattern.permute.xlu0 0
        %1159 = vperm.xlu0 %1158, %v1146
        %v1160 = vpop.permute.xlu0 %1159
        %v1165 = vunpack.c.l.b16 %v1139
        %v1166 = vunpack.c.l.b16 %v1140
        %v1167 = vunpack.c.l.b16 %v1141
        %v1168 = vpack.c.b16 %v1166, %v1165
        %v1169 = vpack.c.b16 %v1167, %v1167
        %v1171 = vsel %vm1079, %v1168, 0
        %v1174 = vsel %vm1079, %v1169, 0
        %1176 = vmatprep.subr.bf16.mxu0 0
        %1177 = vmatpush1.bf16.msra.mxu0 %v1142
        %1178 = vmatprep.subr.bf16.mxu0 0
        %1179 = vmatpush1.bf16.msra.mxu0 %v1143
        %1180 = vmatprep.subr.bf16.mxu0 0
        %1181 = vmatpush1.bf16.msra.mxu0 0
        %1182 = vmatprep.subr.bf16.mxu0 0
        %1183 = vmatpush1.bf16.msra.mxu0 0
        %1184 = vmatprep.subr.bf16.mxu0 0
        %1185 = vmatpush1.bf16.msra.mxu0 0
        %1186 = vmatprep.subr.bf16.mxu0 0
        %1187 = vmatpush1.bf16.msra.mxu0 0
        %1188 = vmatprep.subr.bf16.mxu0 0
        %1189 = vmatpush1.bf16.msra.mxu0 0
        %1190 = vmatprep.subr.bf16.mxu0 0
        %1191 = vmatpush1.bf16.msra.mxu0 0
        %1192 = vmatprep.subr.bf16.mxu0 0
        %1193 = vmatpush1.bf16.msra.mxu0 0
        %1194 = vmatprep.subr.bf16.mxu0 0
        %1195 = vmatpush1.bf16.msra.mxu0 0
        %1196 = vmatprep.subr.bf16.mxu0 0
        %1197 = vmatpush1.bf16.msra.mxu0 0
        %1198 = vmatprep.subr.bf16.mxu0 0
        %1199 = vmatpush1.bf16.msra.mxu0 0
        %1200 = vmatprep.subr.bf16.mxu0 0
        %1201 = vmatpush1.bf16.msra.mxu0 0
        %1202 = vmatprep.subr.bf16.mxu0 0
        %1203 = vmatpush1.bf16.msra.mxu0 0
        %1204 = vmatprep.subr.bf16.mxu0 0
        %1205 = vmatpush1.bf16.msra.mxu0 0
        %1206 = vmatprep.subr.bf16.mxu0 0
        %1207 = vmatpush1.bf16.msra.mxu0 0
        %1208 = vmatprep.mubr.bf16.mxu0 0
        %1209 = vmatmul.mubr.bf16.gmra.mrb[0].mxu0 %v1171
        %v1210 = vpop.f32.mrb[0].mxu0
        %v1211 = vadd.f32 %v1150, %v1210
        %v1212 = vpop.f32.mrb[0].mxu0
        %v1213 = vpop.f32.mrb[0].mxu0
        %v1214 = vadd.f32 %v1155, %v1213
        %v1215 = vpop.f32.mrb[0].mxu0
        %1216 = vmatprep.mubr.bf16.mxu0 0
        %1217 = vmatmul.mubr.bf16.gmra.mrb[0].mxu0 %v1174
        %v1218 = vpop.f32.mrb[0].mxu0
        %v1219 = vadd.f32 %v1160, %v1218
        %v1220 = vpop.f32.mrb[0].mxu0
        %v1221 = vpop.f32.mrb[0].mxu0
        %v1222 = vpop.f32.mrb[0].mxu0
        %1223 = vdwg.mxu0
        %v1224 = vxor.u32 %v1211, 2147483648
        %v1225 = vmul.f32 %v1224, 1.442695
        %v1226 = vpow.pop %v1225
        %v1227 = vadd.f32 %v1226, 1.0
        %v1228 = vrcp.pop %v1227
        %v1229 = vmul.f32 1.0, %v1228
        %v1230 = vtanh.pop %v1214
        %v1231 = vxor.u32 %v1219, 2147483648
        %v1232 = vmul.f32 %v1231, 1.442695
        %v1233 = vpow.pop %v1232
        %v1234 = vadd.f32 %v1233, 1.0
        %v1235 = vrcp.pop %v1234
        %v1236 = vmul.f32 1.0, %v1235
        %v1237 = vmul.f32 %v962, %v1229
        %v1238 = vlaneseq
        %v1239 = vshrl.u32 %v1238, 7
        %v1240 = vsub.s32 0, %v1239
        %v1241 = vrot.slane %v1236, %v1240
        %v1242 = vmul.f32 %v1230, %v1241
        %v1243 = vadd.f32 %v1237, %v1242
        %v1244 = vld [vmem:[%s408] sm:$0x1]
        %v1245 = vstv %s416
        %vm1246 = vcmp.le.f32.partialorder %v1244, %v1245
        %v1247 = vsel %vm1246, 1, 0
        %v1248 = vlaneseq
        %v1249 = vshrl.u32 %v1248, 7
        %v1250 = vsub.s32 0, %v1249
        %v1251 = vrot.slane %v1247, %v1250
        %vm1252 = vcmp.eq.s32.totalorder %v1251, 1
        %v1253 = vsel %vm1252, %v1243, %v962
        %vm1254 = vcmp.gt.f32.partialorder %v962, 0.1
        %v1255 = vsel %vm1254, 1, 0
        %v1256 = vcvt.s32.f32 %v1255
        %vm1257 = vcmp.gt.f32.partialorder %v1253, 0.1
        %v1258 = vsel %vm1257, 1, 0
        %v1259 = vcvt.s32.f32 %v1258
        %v1261 = vrot.slane %v1256, 3
        %v1264 = vrot.slane %v1259, 2
        %vm1266 = vcmask 1040384
        %v1267 = vsel %vm1266, %v1261, %v1264
        %v1268 = vld [vmem:[#allocation3] sm:$0xff]
        %v1269 = vld [vmem:[#allocation3 + $0x8] sm:$0xff]
        %v1270 = vld [vmem:[#allocation3 + $0x10] sm:$0xff]
        %v1271 = vld [vmem:[#allocation3 + $0x18] sm:$0xff]
        %v1272 = vld [vmem:[#allocation3 + $0x20] sm:$0xff]
        %v1273 = vld [vmem:[#allocation3 + $0x28] sm:$0xff]
        %v1274 = vld [vmem:[#allocation3 + $0x30] sm:$0xff]
        %v1275 = vld [vmem:[#allocation3 + $0x38] sm:$0xff]
        %v1276 = vld [vmem:[#allocation3 + $0x40] sm:$0xff]
        %v1277 = vld [vmem:[#allocation3 + $0x48] sm:$0xff]
        %v1278 = vld [vmem:[#allocation3 + $0x50] sm:$0xff]
        %v1279 = vld [vmem:[#allocation3 + $0x58] sm:$0xff]
        %v1280 = vld [vmem:[#allocation3 + $0x60] sm:$0xff]
        %v1281 = vld [vmem:[#allocation3 + $0x68] sm:$0xff]
        %v1282 = vld [vmem:[#allocation3 + $0x70] sm:$0xff]
        %v1283 = vld [vmem:[#allocation3 + $0x78] sm:$0xff]
        %1284 = vmatprep.subr.mxu0 0.0
        %1285 = vmatpush1.msra.mxu0 %v1268
        %1286 = vmatprep.subr.mxu0 0.0
        %1287 = vmatpush1.msra.mxu0 %v1269
        %1288 = vmatprep.subr.mxu0 0.0
        %1289 = vmatpush1.msra.mxu0 %v1270
        %1290 = vmatprep.subr.mxu0 0.0
        %1291 = vmatpush1.msra.mxu0 %v1271
        %1292 = vmatprep.subr.mxu0 0.0
        %1293 = vmatpush1.msra.mxu0 %v1272
        %1294 = vmatprep.subr.mxu0 0.0
        %1295 = vmatpush1.msra.mxu0 %v1273
        %1296 = vmatprep.subr.mxu0 0.0
        %1297 = vmatpush1.msra.mxu0 %v1274
        %1298 = vmatprep.subr.mxu0 0.0
        %1299 = vmatpush1.msra.mxu0 %v1275
        %1300 = vmatprep.subr.mxu0 0.0
        %1301 = vmatpush1.msra.mxu0 %v1276
        %1302 = vmatprep.subr.mxu0 0.0
        %1303 = vmatpush1.msra.mxu0 %v1277
        %1304 = vmatprep.subr.mxu0 0.0
        %1305 = vmatpush1.msra.mxu0 %v1278
        %1306 = vmatprep.subr.mxu0 0.0
        %1307 = vmatpush1.msra.mxu0 %v1279
        %1308 = vmatprep.subr.mxu0 0.0
        %1309 = vmatpush1.msra.mxu0 %v1280
        %1310 = vmatprep.subr.mxu0 0.0
        %1311 = vmatpush1.msra.mxu0 %v1281
        %1312 = vmatprep.subr.mxu0 0.0
        %1313 = vmatpush1.msra.mxu0 %v1282
        %1314 = vmatprep.subr.mxu0 0.0
        %1315 = vmatpush1.msra.mxu0 %v1283
        %1316 = vmatprep.subr.mxu0 0.0
        %1317 = vmatpush1.msra.mxu0 0.0
        %1318 = vmatprep.subr.mxu0 0.0
        %1319 = vmatpush1.msra.mxu0 0.0
        %1320 = vmatprep.subr.mxu0 0.0
        %1321 = vmatpush1.msra.mxu0 0.0
        %1322 = vmatprep.subr.mxu0 0.0
        %1323 = vmatpush1.msra.mxu0 0.0
        %1324 = vmatprep.subr.mxu0 0.0
        %1325 = vmatpush1.msra.mxu0 0.0
        %1326 = vmatprep.subr.mxu0 0.0
        %1327 = vmatpush1.msra.mxu0 0.0
        %1328 = vmatprep.subr.mxu0 0.0
        %1329 = vmatpush1.msra.mxu0 0.0
        %1330 = vmatprep.subr.mxu0 0.0
        %1331 = vmatpush1.msra.mxu0 0.0
        %1332 = vmatprep.subr.mxu0 0.0
        %1333 = vmatpush1.msra.mxu0 0.0
        %1334 = vmatprep.subr.mxu0 0.0
        %1335 = vmatpush1.msra.mxu0 0.0
        %1336 = vmatprep.subr.mxu0 0.0
        %1337 = vmatpush1.msra.mxu0 0.0
        %1338 = vmatprep.subr.mxu0 0.0
        %1339 = vmatpush1.msra.mxu0 0.0
        %1340 = vmatprep.subr.mxu0 0.0
        %1341 = vmatpush1.msra.mxu0 0.0
        %1342 = vmatprep.subr.mxu0 0.0
        %1343 = vmatpush1.msra.mxu0 0.0
        %1344 = vmatprep.subr.mxu0 0.0
        %1345 = vmatpush1.msra.mxu0 0.0
        %1346 = vmatprep.subr.mxu0 0.0
        %1347 = vmatpush1.msra.mxu0 0.0
        %1348 = vmatprep.mubr.f32.mxu0 0.0
        %1349 = vmatmul.mubr.f32.gmra.mrb[0].mxu0 %v1267
        %v1350 = vpop.f32.mrb[0].mxu0
        %v1351 = vadd.f32 0.0, %v1350
        %v1352 = vpop.f32.mrb[0].mxu0
        %1353 = vdwg.mxu0
        %vm1354 = vcmp.gt.f32.partialorder %v1351, 0.1
        %v1355 = vsel %vm1354, 1, 0
        %v1356 = vrot.slane %v1355, 1
        %vm1357 = vcmp.ne.s32.totalorder %v1356, 0
        %vm1358 = vmand %vm1354, %vm1357
        %v1359 = vsel %vm1358, 1, 0
        %v1360 = vcvt.s32.f32 %v1359
        %v1361 = vlaneseq
        %v1362 = vshrl.u32 %v1361, 7
        %v1363 = vsub.s32 0, %v1362
        %v1364 = vrot.slane %v1360, %v1363
        %v1365 = vmul.f32 %v1253, %v1364
        %1366 = vst [vmem:[%s412] sm:$0xff] %v1365
        %p1367 = scmp.lt.s32.totalorder %s21, 3
        %s1368 = scalar_select %p1367, %s21, 3
        %s1369 = smul.addr %s1368, 8
        %s1370 = scalar_lea.vmem %s9, %s1369
        // Predicated region
        $region61: #{_sphnca_batched.1} parent=55 // pred_check
          %p1371 = pneg %p253
        $region62: #{_sphnca_batched.1} parent=55 // pred_check_branch
          %1373 = sbr.rel (%p1371) target = $region64
        $region63: #{_sphnca_batched.1} parent=55 // pred_region
          _
        $region64: #{_sphnca_batched.1} parent=55 // pred_fallthru
          _
      $region56: #{_sphnca_batched.1} parent=5 // pred_fallthru
        _
      %p1374 = scmp.le.s32.totalorder 2, %s16
      // Predicated region
      $region65: #{_sphnca_batched.1} parent=5 // pred_check
        %p1375 = pneg %p1374
      $region66: #{_sphnca_batched.1} parent=5 // pred_check_branch
        %1377 = sbr.rel (%p1375) target = $region68
      $region67: #{_sphnca_batched.1} parent=5 // pred_region
        %s1378 = ssub.s32 %s16, 2
        // Predicated region
        $region69: #{_sphnca_batched.1} parent=67 // pred_check
          %p1379 = pneg %p259
        $region70: #{_sphnca_batched.1} parent=67 // pred_check_branch
          %1381 = sbr.rel (%p1379) target = $region72
        $region71: #{_sphnca_batched.1} parent=67 // pred_region
          %p1382 = scmp.lt.s32.totalorder %s22, 3
          %s1383 = scalar_select %p1382, %s22, 3
          %s1384 = smul.addr %s1383, 8
          %s1385 = scalar_lea.vmem %s9, %s1384
        $region72: #{_sphnca_batched.1} parent=67 // pred_fallthru
          _
      $region68: #{_sphnca_batched.1} parent=5 // pred_fallthru
        _
    $region6: #{_sphnca_batched.1} parent=1 // loop_footer
      %s20 = sadd.s32 1, %s16
    $region7: #{_sphnca_batched.1} parent=1 // loop_footer_branch
      %15 = sbr.rel target = $region3
    $region8: #{_sphnca_batched.1} parent=1 // loop_exit
      _
    %1386 = vsyncpa [#allocation7], 1
    %s1387 = scalar_lea.sflag [#allocation7], 1
    %1388 = vsyncpa %s1387, 1

</llo_original>
